<compile_context>
chip_gen: v7x
topology: tpu7x:2x2x1
jax: 0.10.0
libtpu: 0.0.40
codegen_flags: <defaults>
</compile_context>

<pallas_src>
import jax
import jax.numpy as jnp
from jax.experimental import pallas as pl
from jax.experimental.pallas import tpu as pltpu

# Conservative per-step working-set budget: fits inside the 32 MiB default
# scoped VMEM (v6e/v7x) and leaves headroom under v7x's 64 MiB physical VMEM.
_VMEM_BUDGET_BYTES = 24 * 1024 * 1024


def _pick_tile_h(total, cost_fn, budget=_VMEM_BUDGET_BYTES):
    """Largest divisor of `total` whose per-step VMEM cost fits the budget."""
    for th in range(total, 0, -1):
        if total % th == 0 and cost_fn(th) <= budget:
            return th
    return 1


def _conv3x3_s2_kernel(x_ref, halo_ref, w_ref, b_ref, o_ref):
    """One H-tile of a 3x3 / stride-2 conv on an already spatially padded image.

    x_ref:    (2*tile_h, Wp, Cin)  main input rows for this tile
    halo_ref: (1, Wp, Cin)         one extra (halo) input row below the block
    w_ref:    (9, Cin, Coutp)      weights, tap index = ki*3 + kj
    b_ref:    (1, Coutp)           bias (lane-padded)
    o_ref:    (tile_h, Wout, Coutp)
    """
    tile_h, Wout, Coutp = o_ref.shape
    Cin = x_ref.shape[-1]
    M = tile_h * Wout

    # Initialize the accumulator from the broadcast bias (saves a VALU add).
    acc = jnp.broadcast_to(b_ref[...], (M, Coutp)).astype(jnp.float32)

    # TODO(synk): for small Cin an im2col (M, 9*Cin) single matmul would fill
    # the MXU better than nine K=Cin matmuls; kept per-tap for robust lowering.
    for kj in range(3):
        # ki = 0 / 1: rows come purely from the main block. Leading-dim
        # stride-2 is cheap addressing; only the W-axis stride-2 is a gather.
        p0 = x_ref[pl.ds(0, tile_h, 2), pl.ds(kj, Wout, 2), :]
        p1 = x_ref[pl.ds(1, tile_h, 2), pl.ds(kj, Wout, 2), :]
        # ki = 2: rows 2, 4, ..., 2*tile_h; the last one lives in the halo row.
        h2 = halo_ref[:, pl.ds(kj, Wout, 2), :]
        if tile_h > 1:
            p2 = jnp.concatenate(
                [x_ref[pl.ds(2, tile_h - 1, 2), pl.ds(kj, Wout, 2), :], h2],
                axis=0)
        else:
            p2 = h2
        # Native-dtype operands, f32 accumulation on the MXU.
        acc = acc + jnp.dot(p0.reshape(M, Cin), w_ref[0 * 3 + kj],
                            preferred_element_type=jnp.float32)
        acc = acc + jnp.dot(p1.reshape(M, Cin), w_ref[1 * 3 + kj],
                            preferred_element_type=jnp.float32)
        acc = acc + jnp.dot(p2.reshape(M, Cin), w_ref[2 * 3 + kj],
                            preferred_element_type=jnp.float32)

    o_ref[...] = acc.reshape(tile_h, Wout, Coutp).astype(o_ref.dtype)


def _avgpool2x2_kernel(x_ref, o_ref, rowsum_ref):
    """One H-tile of 2x2 / stride-2 average pooling.

    x_ref: (2*tile_h, W, C),  o_ref: (tile_h, Wout, C),
    rowsum_ref: (tile_h, W, C) f32 VMEM scratch.
    """
    tile_h, Wout, _ = o_ref.shape
    # Sum the two input rows per output row first (leading-dim stride-2 is
    # cheap); only two sublane-strided W extractions remain below.
    rowsum_ref[...] = (x_ref[pl.ds(0, tile_h, 2), :, :].astype(jnp.float32)
                       + x_ref[pl.ds(1, tile_h, 2), :, :].astype(jnp.float32))
    s = rowsum_ref[:, pl.ds(0, Wout, 2), :] + rowsum_ref[:, pl.ds(1, Wout, 2), :]
    o_ref[...] = (s * 0.25).astype(o_ref.dtype)


def downsample2d(x_nchw, *, use_conv=False, padding=1, weight=None, bias=None):
    """Forward pass of Downsample2D. x_nchw: (N, C, H, W)."""
    N, C, H, W = x_nchw.shape
    # TODO(synk): the NCHW->NHWC transpose and the spatial zero-pad below are
    # separate XLA HBM passes; they could be folded into the kernel (in-kernel
    # halo zero-fill) or handled via allow_input_fusion.
    x = jnp.transpose(x_nchw, (0, 2, 3, 1))  # -> NHWC (C on lanes)

    if use_conv:
        Cout = weight.shape[0]
        if padding == 0:
            # F.pad(hidden_states, (0, 1, 0, 1)): pad right/bottom by 1, conv pad=0.
            x = jnp.pad(x, ((0, 0), (0, 1), (0, 1), (0, 0)))
        else:
            x = jnp.pad(x, ((0, 0), (padding, padding), (padding, padding), (0, 0)))
        Hp, Wp = x.shape[1], x.shape[2]
        Hout = (Hp - 3) // 2 + 1
        Wout = (Wp - 3) // 2 + 1

        # Lane-dense output stores: pad Cout up to a multiple of 128, slice after.
        Coutp = Cout if Cout % 128 == 0 else ((Cout + 127) // 128) * 128

        # PyTorch weight (Cout, Cin, kh, kw) -> (kh*kw, Cin, Coutp)
        w_k = jnp.transpose(weight, (2, 3, 1, 0)).reshape(9, C, Cout)
        b_k = bias.reshape(1, Cout)
        if Coutp != Cout:
            w_k = jnp.pad(w_k, ((0, 0), (0, 0), (0, Coutp - Cout)))
            b_k = jnp.pad(b_k, ((0, 0), (0, Coutp - Cout)))

        in_b = x.dtype.itemsize
        w_b = w_k.dtype.itemsize

        def conv_cost(th):
            inp = 2 * (2 * th + 1) * Wp * C * in_b          # main + halo, 2 buffers
            out = 2 * th * Wout * Coutp * in_b               # output, 2 buffers
            wgt = 2 * (9 * C + 1) * Coutp * w_b              # weights + bias
            acc = th * Wout * Coutp * 4                      # f32 accumulator
            tmp = 4 * th * Wout * C * 4                      # patch temporaries
            return inp + out + wgt + acc + tmp

        tile_h = _pick_tile_h(Hout, conv_cost)
        n_h = Hout // tile_h

        out = pl.pallas_call(
            _conv3x3_s2_kernel,
            out_shape=jax.ShapeDtypeStruct((N, Hout, Wout, Coutp), x.dtype),
            grid=(N, n_h),
            in_specs=[
                # Main rows of the padded image for this H-tile.
                pl.BlockSpec((None, 2 * tile_h, Wp, C),
                             lambda n, t: (n, t, 0, 0)),
                # One halo row just below the main block (block size 1 -> the
                # block index is the row index 2*tile_h*(t+1), always in-bounds).
                pl.BlockSpec((None, 1, Wp, C),
                             lambda n, t: (n, (t + 1) * 2 * tile_h, 0, 0)),
                pl.BlockSpec((9, C, Coutp), lambda n, t: (0, 0, 0)),
                pl.BlockSpec((1, Coutp), lambda n, t: (0, 0)),
            ],
            out_specs=pl.BlockSpec((None, tile_h, Wout, Coutp),
                                   lambda n, t: (n, t, 0, 0)),
            compiler_params=pltpu.CompilerParams(
                dimension_semantics=("parallel", "parallel")),
        )(x, x, w_k, b_k)
        if Coutp != Cout:
            out = out[..., :Cout]
    else:
        # AvgPool2d(kernel_size=2, stride=2); module asserts channels == out_channels.
        Hout, Wout = H // 2, W // 2
        in_b = x.dtype.itemsize

        def pool_cost(th):
            return (2 * 2 * th * W * C * in_b      # input block, 2 buffers
                    + 2 * th * Wout * C * in_b     # output block, 2 buffers
                    + th * W * C * 4               # f32 row-sum scratch
                    + 2 * th * Wout * C * 4)       # temporaries

        tile_h = _pick_tile_h(Hout, pool_cost)
        n_h = Hout // tile_h

        out = pl.pallas_call(
            _avgpool2x2_kernel,
            out_shape=jax.ShapeDtypeStruct((N, Hout, Wout, C), x.dtype),
            grid=(N, n_h),
            in_specs=[pl.BlockSpec((None, 2 * tile_h, W, C),
                                   lambda n, t: (n, t, 0, 0))],
            out_specs=pl.BlockSpec((None, tile_h, Wout, C),
                                   lambda n, t: (n, t, 0, 0)),
            scratch_shapes=[pltpu.VMEM((tile_h, W, C), jnp.float32)],
            compiler_params=pltpu.CompilerParams(
                dimension_semantics=("parallel", "parallel")),
        )(x)

    return jnp.transpose(out, (0, 3, 1, 2))  # back to NCHW


if __name__ == "__main__":
    key = jax.random.PRNGKey(0)
    k_x, k_w, k_b = jax.random.split(key, 3)

    N, C, H, W = 2, 4, 16, 16
    Cout = C  # out_channels defaults to channels
    x = jax.random.normal(k_x, (N, C, H, W), jnp.float32)

    # Deterministic synthetic Conv2d params (shapes from nn.Conv2d(C, Cout, 3)).
    fan_in = C * 3 * 3
    bound = 1.0 / (fan_in ** 0.5)
    weight = jax.random.uniform(k_w, (Cout, C, 3, 3), jnp.float32, -bound, bound)
    bias = jax.random.uniform(k_b, (Cout,), jnp.float32, -bound, bound)

    # --- use_conv=True, padding=1 (the standard 'conv' configuration) ---
    y_conv = downsample2d(x, use_conv=True, padding=1, weight=weight, bias=bias)
    jax.block_until_ready(y_conv)
    ref_conv = jax.lax.conv_general_dilated(
        x, weight, window_strides=(2, 2), padding=((1, 1), (1, 1)),
        dimension_numbers=("NCHW", "OIHW", "NCHW"),
    ) + bias.reshape(1, Cout, 1, 1)
    assert y_conv.shape == (N, Cout, H // 2, W // 2)
    assert jnp.allclose(y_conv, ref_conv, atol=1e-5, rtol=1e-5)

    # --- use_conv=True, padding=0 (asymmetric (0,1,0,1) pre-pad) ---
    y_conv0 = downsample2d(x, use_conv=True, padding=0, weight=weight, bias=bias)
    jax.block_until_ready(y_conv0)
    ref_conv0 = jax.lax.conv_general_dilated(
        x, weight, window_strides=(2, 2), padding=((0, 1), (0, 1)),
        dimension_numbers=("NCHW", "OIHW", "NCHW"),
    ) + bias.reshape(1, Cout, 1, 1)
    assert y_conv0.shape == ref_conv0.shape
    assert jnp.allclose(y_conv0, ref_conv0, atol=1e-5, rtol=1e-5)

    # --- use_conv=False (AvgPool2d(2, 2)) ---
    y_pool = downsample2d(x, use_conv=False)
    jax.block_until_ready(y_pool)
    ref_pool = x.reshape(N, C, H // 2, 2, W // 2, 2).mean(axis=(3, 5))
    assert y_pool.shape == (N, C, H // 2, W // 2)
    assert jnp.allclose(y_pool, ref_pool, atol=1e-5, rtol=1e-5)

    print("KERNEL_OK")
</pallas_src>

<mosaic_0001>
module attributes {stable_mosaic.version = 11 : i64} {
  func.func @_conv3x3_s2_kernel(%arg0: i32, %arg1: i32, %arg2: memref<1x16x18x4xf32, #tpu.memory_space<vmem>>, %arg3: memref<1x1x18x4xf32, #tpu.memory_space<vmem>>, %arg4: memref<9x4x128xf32, #tpu.memory_space<vmem>>, %arg5: memref<1x128xf32, #tpu.memory_space<vmem>>, %arg6: memref<1x8x8x128xf32, #tpu.memory_space<vmem>>) attributes {dimension_semantics = [#tpu.dimension_semantics<parallel>, #tpu.dimension_semantics<parallel>], iteration_bounds = array<i64: 2, 1>, scalar_prefetch = 0 : i64, scratch_operands = 0 : i64, tpu.core_type = #tpu.core_type<tc>, window_params = [{transform_indices = @transform_0, window_bounds = array<i64: 1, 16, 18, 4>}, {transform_indices = @transform_1, window_bounds = array<i64: 1, 1, 18, 4>}, {pipeline_mode = #tpu.pipeline_mode<synchronous>, transform_indices = @transform_2, window_bounds = array<i64: 9, 4, 128>}, {pipeline_mode = #tpu.pipeline_mode<synchronous>, transform_indices = @transform_3, window_bounds = array<i64: 1, 128>}, {transform_indices = @transform_4, window_bounds = array<i64: 1, 8, 8, 128>}]} {
    %c0 = arith.constant 0 : index
    %c0_0 = arith.constant 0 : index
    %0 = vector.load %arg5[%c0, %c0_0] : memref<1x128xf32, #tpu.memory_space<vmem>>, vector<1x128xf32>
    %1 = vector.shape_cast %0 : vector<1x128xf32> to vector<1x128xf32>
    %2 = vector.broadcast %1 : vector<1x128xf32> to vector<64x128xf32>
    %c0_1 = arith.constant 0 : index
    %c0_2 = arith.constant 0 : index
    %c0_3 = arith.constant 0 : index
    %c0_4 = arith.constant 0 : index
    %3 = tpu.strided_load %arg2[%c0_1, %c0_2, %c0_3, %c0_4] {strides = array<i32: 1, 2, 2, 1>} : memref<1x16x18x4xf32, #tpu.memory_space<vmem>>, vector<1x8x8x4xf32>
    %4 = vector.shape_cast %3 : vector<1x8x8x4xf32> to vector<8x8x4xf32>
    %c0_5 = arith.constant 0 : index
    %c1 = arith.constant 1 : index
    %c0_6 = arith.constant 0 : index
    %c0_7 = arith.constant 0 : index
    %5 = tpu.strided_load %arg2[%c0_5, %c1, %c0_6, %c0_7] {strides = array<i32: 1, 2, 2, 1>} : memref<1x16x18x4xf32, #tpu.memory_space<vmem>>, vector<1x8x8x4xf32>
    %6 = vector.shape_cast %5 : vector<1x8x8x4xf32> to vector<8x8x4xf32>
    %c0_8 = arith.constant 0 : index
    %c0_9 = arith.constant 0 : index
    %c0_10 = arith.constant 0 : index
    %c0_11 = arith.constant 0 : index
    %7 = tpu.strided_load %arg3[%c0_8, %c0_9, %c0_10, %c0_11] {strides = array<i32: 1, 1, 2, 1>} : memref<1x1x18x4xf32, #tpu.memory_space<vmem>>, vector<1x1x8x4xf32>
    %8 = vector.shape_cast %7 : vector<1x1x8x4xf32> to vector<1x8x4xf32>
    %c0_12 = arith.constant 0 : index
    %c2 = arith.constant 2 : index
    %c0_13 = arith.constant 0 : index
    %c0_14 = arith.constant 0 : index
    %9 = tpu.strided_load %arg2[%c0_12, %c2, %c0_13, %c0_14] {strides = array<i32: 1, 2, 2, 1>} : memref<1x16x18x4xf32, #tpu.memory_space<vmem>>, vector<1x7x8x4xf32>
    %10 = vector.shape_cast %9 : vector<1x7x8x4xf32> to vector<7x8x4xf32>
    %11 = tpu.concatenate %10, %8 in 0 : vector<7x8x4xf32>, vector<1x8x4xf32> -> vector<8x8x4xf32>
    %12 = vector.shape_cast %4 : vector<8x8x4xf32> to vector<64x4xf32>
    %c0_15 = arith.constant 0 : index
    %c0_16 = arith.constant 0 : index
    %c0_17 = arith.constant 0 : index
    %13 = vector.load %arg4[%c0_15, %c0_16, %c0_17] : memref<9x4x128xf32, #tpu.memory_space<vmem>>, vector<1x4x128xf32>
    %14 = vector.shape_cast %13 : vector<1x4x128xf32> to vector<4x128xf32>
    %cst = arith.constant dense<0.000000e+00> : vector<64x128xf32>
    %15 = tpu.matmul %12, %14, %cst {dimension_numbers = #tpu.dot_dimension_numbers<[1], [0], [0], [1], [0, 0, 1, 1], [], []>} : vector<64x4xf32>, vector<4x128xf32>, vector<64x128xf32> -> vector<64x128xf32>
    %16 = arith.addf %2, %15 : vector<64x128xf32>
    %17 = vector.shape_cast %6 : vector<8x8x4xf32> to vector<64x4xf32>
    %c3 = arith.constant 3 : index
    %c0_18 = arith.constant 0 : index
    %c0_19 = arith.constant 0 : index
    %18 = vector.load %arg4[%c3, %c0_18, %c0_19] : memref<9x4x128xf32, #tpu.memory_space<vmem>>, vector<1x4x128xf32>
    %19 = vector.shape_cast %18 : vector<1x4x128xf32> to vector<4x128xf32>
    %cst_20 = arith.constant dense<0.000000e+00> : vector<64x128xf32>
    %20 = tpu.matmul %17, %19, %cst_20 {dimension_numbers = #tpu.dot_dimension_numbers<[1], [0], [0], [1], [0, 0, 1, 1], [], []>} : vector<64x4xf32>, vector<4x128xf32>, vector<64x128xf32> -> vector<64x128xf32>
    %21 = arith.addf %16, %20 : vector<64x128xf32>
    %22 = vector.shape_cast %11 : vector<8x8x4xf32> to vector<64x4xf32>
    %c6 = arith.constant 6 : index
    %c0_21 = arith.constant 0 : index
    %c0_22 = arith.constant 0 : index
    %23 = vector.load %arg4[%c6, %c0_21, %c0_22] : memref<9x4x128xf32, #tpu.memory_space<vmem>>, vector<1x4x128xf32>
    %24 = vector.shape_cast %23 : vector<1x4x128xf32> to vector<4x128xf32>
    %cst_23 = arith.constant dense<0.000000e+00> : vector<64x128xf32>
    %25 = tpu.matmul %22, %24, %cst_23 {dimension_numbers = #tpu.dot_dimension_numbers<[1], [0], [0], [1], [0, 0, 1, 1], [], []>} : vector<64x4xf32>, vector<4x128xf32>, vector<64x128xf32> -> vector<64x128xf32>
    %26 = arith.addf %21, %25 : vector<64x128xf32>
    %c0_24 = arith.constant 0 : index
    %c0_25 = arith.constant 0 : index
    %c1_26 = arith.constant 1 : index
    %c0_27 = arith.constant 0 : index
    %27 = tpu.strided_load %arg2[%c0_24, %c0_25, %c1_26, %c0_27] {strides = array<i32: 1, 2, 2, 1>} : memref<1x16x18x4xf32, #tpu.memory_space<vmem>>, vector<1x8x8x4xf32>
    %28 = vector.shape_cast %27 : vector<1x8x8x4xf32> to vector<8x8x4xf32>
    %c0_28 = arith.constant 0 : index
    %c1_29 = arith.constant 1 : index
    %c1_30 = arith.constant 1 : index
    %c0_31 = arith.constant 0 : index
    %29 = tpu.strided_load %arg2[%c0_28, %c1_29, %c1_30, %c0_31] {strides = array<i32: 1, 2, 2, 1>} : memref<1x16x18x4xf32, #tpu.memory_space<vmem>>, vector<1x8x8x4xf32>
    %30 = vector.shape_cast %29 : vector<1x8x8x4xf32> to vector<8x8x4xf32>
    %c0_32 = arith.constant 0 : index
    %c0_33 = arith.constant 0 : index
    %c1_34 = arith.constant 1 : index
    %c0_35 = arith.constant 0 : index
    %31 = tpu.strided_load %arg3[%c0_32, %c0_33, %c1_34, %c0_35] {strides = array<i32: 1, 1, 2, 1>} : memref<1x1x18x4xf32, #tpu.memory_space<vmem>>, vector<1x1x8x4xf32>
    %32 = vector.shape_cast %31 : vector<1x1x8x4xf32> to vector<1x8x4xf32>
    %c0_36 = arith.constant 0 : index
    %c2_37 = arith.constant 2 : index
    %c1_38 = arith.constant 1 : index
    %c0_39 = arith.constant 0 : index
    %33 = tpu.strided_load %arg2[%c0_36, %c2_37, %c1_38, %c0_39] {strides = array<i32: 1, 2, 2, 1>} : memref<1x16x18x4xf32, #tpu.memory_space<vmem>>, vector<1x7x8x4xf32>
    %34 = vector.shape_cast %33 : vector<1x7x8x4xf32> to vector<7x8x4xf32>
    %35 = tpu.concatenate %34, %32 in 0 : vector<7x8x4xf32>, vector<1x8x4xf32> -> vector<8x8x4xf32>
    %36 = vector.shape_cast %28 : vector<8x8x4xf32> to vector<64x4xf32>
    %c1_40 = arith.constant 1 : index
    %c0_41 = arith.constant 0 : index
    %c0_42 = arith.constant 0 : index
    %37 = vector.load %arg4[%c1_40, %c0_41, %c0_42] : memref<9x4x128xf32, #tpu.memory_space<vmem>>, vector<1x4x128xf32>
    %38 = vector.shape_cast %37 : vector<1x4x128xf32> to vector<4x128xf32>
    %cst_43 = arith.constant dense<0.000000e+00> : vector<64x128xf32>
    %39 = tpu.matmul %36, %38, %cst_43 {dimension_numbers = #tpu.dot_dimension_numbers<[1], [0], [0], [1], [0, 0, 1, 1], [], []>} : vector<64x4xf32>, vector<4x128xf32>, vector<64x128xf32> -> vector<64x128xf32>
    %40 = arith.addf %26, %39 : vector<64x128xf32>
    %41 = vector.shape_cast %30 : vector<8x8x4xf32> to vector<64x4xf32>
    %c4 = arith.constant 4 : index
    %c0_44 = arith.constant 0 : index
    %c0_45 = arith.constant 0 : index
    %42 = vector.load %arg4[%c4, %c0_44, %c0_45] : memref<9x4x128xf32, #tpu.memory_space<vmem>>, vector<1x4x128xf32>
    %43 = vector.shape_cast %42 : vector<1x4x128xf32> to vector<4x128xf32>
    %cst_46 = arith.constant dense<0.000000e+00> : vector<64x128xf32>
    %44 = tpu.matmul %41, %43, %cst_46 {dimension_numbers = #tpu.dot_dimension_numbers<[1], [0], [0], [1], [0, 0, 1, 1], [], []>} : vector<64x4xf32>, vector<4x128xf32>, vector<64x128xf32> -> vector<64x128xf32>
    %45 = arith.addf %40, %44 : vector<64x128xf32>
    %46 = vector.shape_cast %35 : vector<8x8x4xf32> to vector<64x4xf32>
    %c7 = arith.constant 7 : index
    %c0_47 = arith.constant 0 : index
    %c0_48 = arith.constant 0 : index
    %47 = vector.load %arg4[%c7, %c0_47, %c0_48] : memref<9x4x128xf32, #tpu.memory_space<vmem>>, vector<1x4x128xf32>
    %48 = vector.shape_cast %47 : vector<1x4x128xf32> to vector<4x128xf32>
    %cst_49 = arith.constant dense<0.000000e+00> : vector<64x128xf32>
    %49 = tpu.matmul %46, %48, %cst_49 {dimension_numbers = #tpu.dot_dimension_numbers<[1], [0], [0], [1], [0, 0, 1, 1], [], []>} : vector<64x4xf32>, vector<4x128xf32>, vector<64x128xf32> -> vector<64x128xf32>
    %50 = arith.addf %45, %49 : vector<64x128xf32>
    %c0_50 = arith.constant 0 : index
    %c0_51 = arith.constant 0 : index
    %c2_52 = arith.constant 2 : index
    %c0_53 = arith.constant 0 : index
    %51 = tpu.strided_load %arg2[%c0_50, %c0_51, %c2_52, %c0_53] {strides = array<i32: 1, 2, 2, 1>} : memref<1x16x18x4xf32, #tpu.memory_space<vmem>>, vector<1x8x8x4xf32>
    %52 = vector.shape_cast %51 : vector<1x8x8x4xf32> to vector<8x8x4xf32>
    %c0_54 = arith.constant 0 : index
    %c1_55 = arith.constant 1 : index
    %c2_56 = arith.constant 2 : index
    %c0_57 = arith.constant 0 : index
    %53 = tpu.strided_load %arg2[%c0_54, %c1_55, %c2_56, %c0_57] {strides = array<i32: 1, 2, 2, 1>} : memref<1x16x18x4xf32, #tpu.memory_space<vmem>>, vector<1x8x8x4xf32>
    %54 = vector.shape_cast %53 : vector<1x8x8x4xf32> to vector<8x8x4xf32>
    %c0_58 = arith.constant 0 : index
    %c0_59 = arith.constant 0 : index
    %c2_60 = arith.constant 2 : index
    %c0_61 = arith.constant 0 : index
    %55 = tpu.strided_load %arg3[%c0_58, %c0_59, %c2_60, %c0_61] {strides = array<i32: 1, 1, 2, 1>} : memref<1x1x18x4xf32, #tpu.memory_space<vmem>>, vector<1x1x8x4xf32>
    %56 = vector.shape_cast %55 : vector<1x1x8x4xf32> to vector<1x8x4xf32>
    %c0_62 = arith.constant 0 : index
    %c2_63 = arith.constant 2 : index
    %c2_64 = arith.constant 2 : index
    %c0_65 = arith.constant 0 : index
    %57 = tpu.strided_load %arg2[%c0_62, %c2_63, %c2_64, %c0_65] {strides = array<i32: 1, 2, 2, 1>} : memref<1x16x18x4xf32, #tpu.memory_space<vmem>>, vector<1x7x8x4xf32>
    %58 = vector.shape_cast %57 : vector<1x7x8x4xf32> to vector<7x8x4xf32>
    %59 = tpu.concatenate %58, %56 in 0 : vector<7x8x4xf32>, vector<1x8x4xf32> -> vector<8x8x4xf32>
    %60 = vector.shape_cast %52 : vector<8x8x4xf32> to vector<64x4xf32>
    %c2_66 = arith.constant 2 : index
    %c0_67 = arith.constant 0 : index
    %c0_68 = arith.constant 0 : index
    %61 = vector.load %arg4[%c2_66, %c0_67, %c0_68] : memref<9x4x128xf32, #tpu.memory_space<vmem>>, vector<1x4x128xf32>
    %62 = vector.shape_cast %61 : vector<1x4x128xf32> to vector<4x128xf32>
    %cst_69 = arith.constant dense<0.000000e+00> : vector<64x128xf32>
    %63 = tpu.matmul %60, %62, %cst_69 {dimension_numbers = #tpu.dot_dimension_numbers<[1], [0], [0], [1], [0, 0, 1, 1], [], []>} : vector<64x4xf32>, vector<4x128xf32>, vector<64x128xf32> -> vector<64x128xf32>
    %64 = arith.addf %50, %63 : vector<64x128xf32>
    %65 = vector.shape_cast %54 : vector<8x8x4xf32> to vector<64x4xf32>
    %c5 = arith.constant 5 : index
    %c0_70 = arith.constant 0 : index
    %c0_71 = arith.constant 0 : index
    %66 = vector.load %arg4[%c5, %c0_70, %c0_71] : memref<9x4x128xf32, #tpu.memory_space<vmem>>, vector<1x4x128xf32>
    %67 = vector.shape_cast %66 : vector<1x4x128xf32> to vector<4x128xf32>
    %cst_72 = arith.constant dense<0.000000e+00> : vector<64x128xf32>
    %68 = tpu.matmul %65, %67, %cst_72 {dimension_numbers = #tpu.dot_dimension_numbers<[1], [0], [0], [1], [0, 0, 1, 1], [], []>} : vector<64x4xf32>, vector<4x128xf32>, vector<64x128xf32> -> vector<64x128xf32>
    %69 = arith.addf %64, %68 : vector<64x128xf32>
    %70 = vector.shape_cast %59 : vector<8x8x4xf32> to vector<64x4xf32>
    %c8 = arith.constant 8 : index
    %c0_73 = arith.constant 0 : index
    %c0_74 = arith.constant 0 : index
    %71 = vector.load %arg4[%c8, %c0_73, %c0_74] : memref<9x4x128xf32, #tpu.memory_space<vmem>>, vector<1x4x128xf32>
    %72 = vector.shape_cast %71 : vector<1x4x128xf32> to vector<4x128xf32>
    %cst_75 = arith.constant dense<0.000000e+00> : vector<64x128xf32>
    %73 = tpu.matmul %70, %72, %cst_75 {dimension_numbers = #tpu.dot_dimension_numbers<[1], [0], [0], [1], [0, 0, 1, 1], [], []>} : vector<64x4xf32>, vector<4x128xf32>, vector<64x128xf32> -> vector<64x128xf32>
    %74 = arith.addf %69, %73 : vector<64x128xf32>
    %75 = vector.shape_cast %74 : vector<64x128xf32> to vector<8x8x128xf32>
    %c0_76 = arith.constant 0 : index
    %c0_77 = arith.constant 0 : index
    %c0_78 = arith.constant 0 : index
    %c0_79 = arith.constant 0 : index
    %76 = vector.load %arg6[%c0_76, %c0_77, %c0_78, %c0_79] : memref<1x8x8x128xf32, #tpu.memory_space<vmem>>, vector<1x8x8x128xf32>
    %77 = vector.shape_cast %76 : vector<1x8x8x128xf32> to vector<8x8x128xf32>
    %78 = vector.shape_cast %75 : vector<8x8x128xf32> to vector<1x8x8x128xf32>
    tpu.vector_store %arg6[%c0_76, %c0_77, %c0_78, %c0_79], %78 {strides = array<i32>} : memref<1x8x8x128xf32, #tpu.memory_space<vmem>>, vector<1x8x8x128xf32>,
    return
  }
  func.func @transform_0(%arg0: i32, %arg1: i32) -> (i32, i32, i32, i32) {
    %c0_i32 = arith.constant 0 : i32
    %c0_i32_0 = arith.constant 0 : i32
    %c0_i32_1 = arith.constant 0 : i32
    return %arg0, %arg1, %c0_i32, %c0_i32_0 : i32, i32, i32, i32
  }
  func.func @transform_1(%arg0: i32, %arg1: i32) -> (i32, i32, i32, i32) {
    %c1_i32 = arith.constant 1 : i32
    %0 = arith.addi %arg1, %c1_i32 : i32
    %c2_i32 = arith.constant 2 : i32
    %1 = arith.muli %0, %c2_i32 : i32
    %c8_i32 = arith.constant 8 : i32
    %2 = arith.muli %1, %c8_i32 : i32
    %c0_i32 = arith.constant 0 : i32
    %c0_i32_0 = arith.constant 0 : i32
    %c0_i32_1 = arith.constant 0 : i32
    return %arg0, %2, %c0_i32, %c0_i32_0 : i32, i32, i32, i32
  }
  func.func @transform_2(%arg0: i32, %arg1: i32) -> (i32, i32, i32) {
    %c0_i32 = arith.constant 0 : i32
    %c0_i32_0 = arith.constant 0 : i32
    %c0_i32_1 = arith.constant 0 : i32
    %c0_i32_2 = arith.constant 0 : i32
    return %c0_i32, %c0_i32_0, %c0_i32_1 : i32, i32, i32
  }
  func.func @transform_3(%arg0: i32, %arg1: i32) -> (i32, i32) {
    %c0_i32 = arith.constant 0 : i32
    %c0_i32_0 = arith.constant 0 : i32
    %c0_i32_1 = arith.constant 0 : i32
    return %c0_i32, %c0_i32_0 : i32, i32
  }
  func.func @transform_4(%arg0: i32, %arg1: i32) -> (i32, i32, i32, i32) {
    %c0_i32 = arith.constant 0 : i32
    %c0_i32_0 = arith.constant 0 : i32
    %c0_i32_1 = arith.constant 0 : i32
    return %arg0, %arg1, %c0_i32, %c0_i32_0 : i32, i32, i32, i32
  }
}

</mosaic_0001>

<llo_original>
// kernel: tpu_custom_call.1
$region0: #{tpu_custom_call.1}
  #allocation0 [shape = 'u32[]', space=smem, size = 0x4, offset = 0x4, fixed_abs, tag = 'smem constant byte address 0x4 - core index']
  #allocation1 [shape = 'u32[144,128]{1,0:T(1,128)}', space=vmem, size = 0x12000, scoped, tag = 'internal scratch']
  %s0 = inlined_call_operand.vmem [shape: f32[2,18,18,4], index: 0, kind: input, shape index: {}]
  %s1 = inlined_call_operand.vmem [shape: f32[2,18,18,4], index: 1, kind: input, shape index: {}]
  %s2 = inlined_call_operand.vmem [shape: f32[9,4,128], index: 2, kind: input, shape index: {}]
  %s3 = inlined_call_operand.vmem [shape: f32[1,128], index: 3, kind: input, shape index: {}]
  %s4 = inlined_call_operand.hbm [shape: f32[2,8,8,128], index: 4, kind: output, shape index: {}]
  %s5 = sld [smem:[#allocation0]]
  $region49: #{tpu_custom_call.1} parent=0
    _
  %s7 = ssub.s32 1, %s5
  %s8 = scalar_select 0, %s7, %s5
  $region1: #{tpu_custom_call.1} parent=0
    #allocation2 [shape = 'u8[65536]{0}', space=vmem, size = 0x10000, scoped, tag = 'output window, operand 0']
    #allocation3 [shape = 's32[2]{0}', space=sflag, size = 0x8, scoped, tag = 'scoped memory for tpu_custom_call.1']
    %9 = vsyncpa [#allocation3], 0
    %s10 = scalar_lea.sflag [#allocation3], 1
    %11 = vsyncpa %s10, 0
    loop: start=0, step=1, limit=4
    $region2: #{tpu_custom_call.1} parent=1 // loop_pre_header
      _
    $region3: #{tpu_custom_call.1} parent=1 // loop_header
      %s13 = sphi 0, %s17
      %p14 = scmp.ge.s32.totalorder %s13, 4
      %s20 = sphi 0, %s32
      %s21 = sphi 0, %s28
      %s22 = sphi 0, %s20
      %s23 = sphi 0, %s21
      %s24 = sphi 0, %s22
      %s25 = sphi 0, %s23
      %s37 = sphi 0, %s39
      %s40 = sphi 0, %s37
      %s41 = sphi 0, %s40
      %s57 = sphi 0, %s41
      %s69 = sphi 0, %s71
      %s72 = sphi 0, %s69
      %s73 = sphi 0, %s72
      %s89 = sphi 0, %s73
      %s93 = sphi 0, %s93
      %s95 = sphi 0, %s93
      %s96 = sphi 0, %s95
      %s110 = sphi 0, %s96
      %s114 = sphi 0, %s114
      %s116 = sphi 0, %s114
      %s117 = sphi 0, %s116
      %s131 = sphi 0, %s117
      %s139 = sphi 0, %s141
      %s142 = sphi 0, %s139
      %s143 = sphi 0, %s142
      %s159 = sphi 0, %s143
    $region4: #{tpu_custom_call.1} parent=1 // loop_header_branch
      %16 = sbr.rel (%p14) target = $region8
    $region5: #{tpu_custom_call.1} parent=1 // loop_body
      %s18 = ssub.s32 %s13, 1
      %s19 = ssub.s32 %s13, 2
      %s26 = sadd.s32 1, %s21
      %p27 = scmp.ge.s32.totalorder %s26, 1
      %s28 = scalar_select %p27, 0, %s26
      %s29 = sadd.s32 1, %s20
      %s30 = scalar_select %p27, %s29, %s20
      %p31 = scmp.ge.s32.totalorder %s30, 2
      %s32 = scalar_select %p31, 0, %s30
      %s33 = ssub.s32 %s20, %s32
      %s34 = ssub.s32 %s21, %s28
      %s35 = sor.u32 %s33, %s34
      %p36 = scmp.eq.s32.totalorder %s35, 0
      %s38 = sadd.s32 %s37, 1
      %s39 = scalar_select %p36, %s37, %s38
      %p42 = pneg %p36
      %p43 = scmp.eq.s32.totalorder %s13, 1
      %p44 = por %p42, %p43
      %p45 = scmp.ne.s32.totalorder %s37, %s40
      %p46 = scmp.eq.s32.totalorder %s13, 0
      %p47 = por %p45, %p46
      %p48 = scmp.ne.s32.totalorder %s37, %s40
      %p49 = scmp.eq.s32.totalorder %s18, 1
      %p50 = por %p48, %p49
      %p51 = scmp.ne.s32.totalorder %s40, %s41
      %p52 = scmp.eq.s32.totalorder %s18, 0
      %p53 = por %p51, %p52
      %p54 = scmp.ne.s32.totalorder %s40, %s41
      %p55 = scmp.eq.s32.totalorder %s19, 1
      %p56 = por %p54, %p55
      %p58 = scmp.ne.s32.totalorder %s41, %s57
      %p59 = scmp.eq.s32.totalorder %s19, 0
      %p60 = por %p58, %p59
      %s61 = sadd.s32 %s21, 1
      %s62 = smul.u32 %s61, 16
      %s63 = sadd.s32 %s28, 1
      %s64 = smul.u32 %s63, 16
      %s65 = ssub.s32 %s20, %s32
      %s66 = ssub.s32 %s62, %s64
      %s67 = sor.u32 %s65, %s66
      %p68 = scmp.eq.s32.totalorder %s67, 0
      %s70 = sadd.s32 %s69, 1
      %s71 = scalar_select %p68, %s69, %s70
      %p74 = pneg %p68
      %p75 = scmp.eq.s32.totalorder %s13, 1
      %p76 = por %p74, %p75
      %p77 = scmp.ne.s32.totalorder %s69, %s72
      %p78 = scmp.eq.s32.totalorder %s13, 0
      %p79 = por %p77, %p78
      %p80 = scmp.ne.s32.totalorder %s69, %s72
      %p81 = scmp.eq.s32.totalorder %s18, 1
      %p82 = por %p80, %p81
      %p83 = scmp.ne.s32.totalorder %s72, %s73
      %p84 = scmp.eq.s32.totalorder %s18, 0
      %p85 = por %p83, %p84
      %p86 = scmp.ne.s32.totalorder %s72, %s73
      %p87 = scmp.eq.s32.totalorder %s19, 1
      %p88 = por %p86, %p87
      %p90 = scmp.ne.s32.totalorder %s73, %s89
      %p91 = scmp.eq.s32.totalorder %s19, 0
      %p92 = por %p90, %p91
      %s94 = sadd.s32 %s93, 1
      %p97 = scmp.eq.s32.totalorder %s13, 1
      %p98 = scmp.ne.s32.totalorder %s93, %s95
      %p99 = scmp.eq.s32.totalorder %s13, 0
      %p100 = por %p98, %p99
      %p101 = scmp.ne.s32.totalorder %s93, %s95
      %p102 = scmp.eq.s32.totalorder %s18, 1
      %p103 = por %p101, %p102
      %p104 = scmp.ne.s32.totalorder %s95, %s96
      %p105 = scmp.eq.s32.totalorder %s18, 0
      %p106 = por %p104, %p105
      %p107 = scmp.ne.s32.totalorder %s95, %s96
      %p108 = scmp.eq.s32.totalorder %s19, 1
      %p109 = por %p107, %p108
      %p111 = scmp.ne.s32.totalorder %s96, %s110
      %p112 = scmp.eq.s32.totalorder %s19, 0
      %p113 = por %p111, %p112
      %s115 = sadd.s32 %s114, 1
      %p118 = scmp.eq.s32.totalorder %s13, 1
      %p119 = scmp.ne.s32.totalorder %s114, %s116
      %p120 = scmp.eq.s32.totalorder %s13, 0
      %p121 = por %p119, %p120
      %p122 = scmp.ne.s32.totalorder %s114, %s116
      %p123 = scmp.eq.s32.totalorder %s18, 1
      %p124 = por %p122, %p123
      %p125 = scmp.ne.s32.totalorder %s116, %s117
      %p126 = scmp.eq.s32.totalorder %s18, 0
      %p127 = por %p125, %p126
      %p128 = scmp.ne.s32.totalorder %s116, %s117
      %p129 = scmp.eq.s32.totalorder %s19, 1
      %p130 = por %p128, %p129
      %p132 = scmp.ne.s32.totalorder %s117, %s131
      %p133 = scmp.eq.s32.totalorder %s19, 0
      %p134 = por %p132, %p133
      %s135 = ssub.s32 %s20, %s32
      %s136 = ssub.s32 %s21, %s28
      %s137 = sor.u32 %s135, %s136
      %p138 = scmp.eq.s32.totalorder %s137, 0
      %s140 = sadd.s32 %s139, 1
      %s141 = scalar_select %p138, %s139, %s140
      %p144 = pneg %p138
      %p145 = scmp.eq.s32.totalorder %s13, 1
      %p146 = por %p144, %p145
      %p147 = scmp.ne.s32.totalorder %s139, %s142
      %p148 = scmp.eq.s32.totalorder %s13, 0
      %p149 = por %p147, %p148
      %p150 = scmp.ne.s32.totalorder %s139, %s142
      %p151 = scmp.eq.s32.totalorder %s18, 1
      %p152 = por %p150, %p151
      %p153 = scmp.ne.s32.totalorder %s142, %s143
      %p154 = scmp.eq.s32.totalorder %s18, 0
      %p155 = por %p153, %p154
      %p156 = scmp.ne.s32.totalorder %s142, %s143
      %p157 = scmp.eq.s32.totalorder %s19, 1
      %p158 = por %p156, %p157
      %p160 = scmp.ne.s32.totalorder %s143, %s159
      %p161 = scmp.eq.s32.totalorder %s19, 0
      %p162 = por %p160, %p161
      %p163 = scmp.le.s32.totalorder 1, %s13
      %p164 = scmp.lt.s32.totalorder %s13, 3
      %p165 = pnand %p163, %p164
      %p166 = pneg %p165
      // Predicated region
      $region9: #{tpu_custom_call.1} parent=5 // pred_check
        _
      $region10: #{tpu_custom_call.1} parent=5 // pred_check_branch
        %168 = sbr.rel (%p165) target = $region12
      $region11: #{tpu_custom_call.1} parent=5 // pred_region
        %s169 = ssub.s32 %s13, 1
        // Predicated region
        $region13: #{tpu_custom_call.1} parent=11 // pred_check
          %p170 = pneg %p106
        $region14: #{tpu_custom_call.1} parent=11 // pred_check_branch
          %172 = sbr.rel (%p170) target = $region16
        $region15: #{tpu_custom_call.1} parent=11 // pred_region
          _
        $region16: #{tpu_custom_call.1} parent=11 // pred_fallthru
          _
        // Predicated region
        $region17: #{tpu_custom_call.1} parent=11 // pred_check
          %p173 = pneg %p127
        $region18: #{tpu_custom_call.1} parent=11 // pred_check_branch
          %175 = sbr.rel (%p173) target = $region20
        $region19: #{tpu_custom_call.1} parent=11 // pred_region
          _
        $region20: #{tpu_custom_call.1} parent=11 // pred_fallthru
          _
      $region12: #{tpu_custom_call.1} parent=5 // pred_fallthru
        _
      %p176 = scmp.lt.s32.totalorder %s13, 2
      // Predicated region
      $region21: #{tpu_custom_call.1} parent=5 // pred_check
        %p177 = pneg %p176
      $region22: #{tpu_custom_call.1} parent=5 // pred_check_branch
        %179 = sbr.rel (%p177) target = $region24
      $region23: #{tpu_custom_call.1} parent=5 // pred_region
        // Predicated region
        $region25: #{tpu_custom_call.1} parent=23 // pred_check
          %p180 = pneg %p47
        $region26: #{tpu_custom_call.1} parent=23 // pred_check_branch
          %182 = sbr.rel (%p180) target = $region28
        $region27: #{tpu_custom_call.1} parent=23 // pred_region
          %s183 = smul.u32 16, %s21
          %s184 = ssub.s32 18, %s183
          %p185 = scmp.lt.s32.totalorder %s184, 16
          %s186 = scalar_select %p185, %s184, 16
          %s187 = smul.u32 128, %s186
          %s188 = smul.u32 %s187, 3
          %p189 = scmp.lt.s32.totalorder %s20, 1
          %s190 = scalar_select %p189, %s20, 1
          %p191 = scmp.lt.s32.totalorder %s183, 17
          %s192 = scalar_select %p191, %s183, 17
          %s193 = smul.addr %s192, 3
          %s194 = smul.addr %s190, 54
          %s195 = sadd.s32 %s193, %s194
          %s196 = smul.addr %s195, 8
          %s197 = scalar_lea.vmem %s0, %s196
          %s198 = smul.u32 16, %s21
          %s199 = ssub.s32 18, %s198
          %p200 = scmp.lt.s32.totalorder %s199, 16
          %s201 = scalar_select %p200, %s199, 16
          %s202 = smul.u32 128, %s201
          %s203 = smul.u32 %s202, 3
        $region28: #{tpu_custom_call.1} parent=23 // pred_fallthru
          _
        // Predicated region
        $region29: #{tpu_custom_call.1} parent=23 // pred_check
          %p204 = pneg %p79
        $region30: #{tpu_custom_call.1} parent=23 // pred_check_branch
          %206 = sbr.rel (%p204) target = $region32
        $region31: #{tpu_custom_call.1} parent=23 // pred_region
          %s207 = sadd.s32 %s21, 1
          %s208 = smul.u32 %s207, 16
          %p209 = scmp.lt.s32.totalorder %s20, 1
          %s210 = scalar_select %p209, %s20, 1
          %p211 = scmp.lt.s32.totalorder %s208, 17
          %s212 = scalar_select %p211, %s208, 17
          %s213 = smul.addr %s212, 3
          %s214 = smul.addr %s210, 54
          %s215 = sadd.s32 %s213, %s214
          %s216 = smul.addr %s215, 8
          %s217 = scalar_lea.vmem %s1, %s216
          %s218 = sadd.s32 %s21, 1
          %s219 = smul.u32 %s218, 16
        $region32: #{tpu_custom_call.1} parent=23 // pred_fallthru
          _
      $region24: #{tpu_custom_call.1} parent=5 // pred_fallthru
        _
      %p220 = scmp.le.s32.totalorder 1, %s13
      %p221 = scmp.lt.s32.totalorder %s13, 3
      %p222 = pnand %p220, %p221
      %p223 = pneg %p222
      // Predicated region
      $region33: #{tpu_custom_call.1} parent=5 // pred_check
        _
      $region34: #{tpu_custom_call.1} parent=5 // pred_check_branch
        %225 = sbr.rel (%p222) target = $region36
      $region35: #{tpu_custom_call.1} parent=5 // pred_region
        %s226 = ssub.s32 %s13, 1
        %s227 = smul.u32 16, %s23
        %s228 = ssub.s32 18, %s227
        %p229 = scmp.lt.s32.totalorder %s228, 16
        %s230 = scalar_select %p229, %s228, 16
        %s231 = smul.u32 128, %s230
        %s232 = smul.u32 %s231, 3
        %p233 = scmp.lt.s32.totalorder %s22, 1
        %s234 = scalar_select %p233, %s22, 1
        %p235 = scmp.lt.s32.totalorder %s227, 17
        %s236 = scalar_select %p235, %s227, 17
        %s237 = smul.addr %s236, 3
        %s238 = smul.addr %s234, 54
        %s239 = sadd.s32 %s237, %s238
        %s240 = smul.addr %s239, 8
        %s241 = scalar_lea.vmem %s0, %s240
        %p242 = pneg %p53
        %p243 = pneg %p50
        %s244 = sadd.s32 %s23, 1
        %s245 = smul.u32 %s244, 16
        %p246 = scmp.lt.s32.totalorder %s22, 1
        %s247 = scalar_select %p246, %s22, 1
        %p248 = scmp.lt.s32.totalorder %s245, 17
        %s249 = scalar_select %p248, %s245, 17
        %s250 = smul.addr %s249, 3
        %s251 = smul.addr %s247, 54
        %s252 = sadd.s32 %s250, %s251
        %s253 = smul.addr %s252, 8
        %s254 = scalar_lea.vmem %s1, %s253
        %p255 = pneg %p85
        %p256 = pneg %p82
        %p257 = pneg %p106
        %p258 = pneg %p103
        %p259 = pneg %p127
        %p260 = pneg %p124
        %p261 = pneg %p155
        %p262 = pneg %p152
        %s263 = sand.u32 %s142, 1
        %s264 = scalar_lea.sflag [#allocation3], %s263
        %s265 = sand.u32 %s142, 1
        %s266 = smul.addr %s265, 64
        %s267 = scalar_lea.vmem [#allocation2], %s266
        %s268 = smul.u32 16, %s23
        %s269 = ssub.s32 18, %s268
        %p270 = scmp.lt.s32.totalorder %s269, 16
        %s271 = scalar_select %p270, %s269, 16
        %s272 = smul.u32 128, %s271
        %s273 = smul.u32 %s272, 3
        %p274 = scmp.lt.s32.totalorder %s22, 1
        %s275 = scalar_select %p274, %s22, 1
        %p276 = scmp.lt.s32.totalorder %s268, 17
        %s277 = scalar_select %p276, %s268, 17
        %s278 = smul.addr %s277, 3
        %s279 = smul.addr %s275, 54
        %s280 = sadd.s32 %s278, %s279
        %s281 = smul.addr %s280, 8
        %s282 = scalar_lea.vmem %s0, %s281
        %s283 = smul.u32 16, %s23
        %s284 = ssub.s32 18, %s283
        %p285 = scmp.lt.s32.totalorder %s284, 16
        %s286 = scalar_select %p285, %s284, 16
        %s287 = smul.u32 128, %s286
        %s288 = smul.u32 %s287, 3
        %s289 = sadd.s32 %s23, 1
        %s290 = smul.u32 %s289, 16
        %p291 = scmp.lt.s32.totalorder %s22, 1
        %s292 = scalar_select %p291, %s22, 1
        %p293 = scmp.lt.s32.totalorder %s290, 17
        %s294 = scalar_select %p293, %s290, 17
        %s295 = smul.addr %s294, 3
        %s296 = smul.addr %s292, 54
        %s297 = sadd.s32 %s295, %s296
        %s298 = smul.addr %s297, 8
        %s299 = scalar_lea.vmem %s1, %s298
        %s300 = sadd.s32 %s23, 1
        %s301 = smul.u32 %s300, 16
        %s302 = smul.u32 8, %s23
        %v303 = vld [vmem:[%s3] sm:$0x1]
        %v305 = vlaneseq
        %v306 = vshrl.u32 %v305, 7
        %v307 = vsub.s32 0, %v306
        %v308 = vrot.slane %v303, %v307
        %v310 = vld [vmem:[%s282] ss:$2 sm:$0xff]
        %s311 = scalar_lea.vmem %s282, 48
        %v312 = vld [vmem:[%s311] ss:$2 sm:$0xff]
        %s313 = scalar_lea.vmem %s282, 96
        %v314 = vld [vmem:[%s313] ss:$2 sm:$0xff]
        %s315 = scalar_lea.vmem %s282, 144
        %v316 = vld [vmem:[%s315] ss:$2 sm:$0xff]
        %s317 = scalar_lea.vmem %s282, 192
        %v318 = vld [vmem:[%s317] ss:$2 sm:$0xff]
        %s319 = scalar_lea.vmem %s282, 240
        %v320 = vld [vmem:[%s319] ss:$2 sm:$0xff]
        %s321 = scalar_lea.vmem %s282, 288
        %v322 = vld [vmem:[%s321] ss:$2 sm:$0xff]
        %s323 = scalar_lea.vmem %s282, 336
        %v324 = vld [vmem:[%s323] ss:$2 sm:$0xff]
        %s325 = scalar_lea.vmem %s282, 24
        %v326 = vld [vmem:[%s325] ss:$2 sm:$0xff]
        %s327 = scalar_lea.vmem %s325, 48
        %v328 = vld [vmem:[%s327] ss:$2 sm:$0xff]
        %s329 = scalar_lea.vmem %s325, 96
        %v330 = vld [vmem:[%s329] ss:$2 sm:$0xff]
        %s331 = scalar_lea.vmem %s325, 144
        %v332 = vld [vmem:[%s331] ss:$2 sm:$0xff]
        %s333 = scalar_lea.vmem %s325, 192
        %v334 = vld [vmem:[%s333] ss:$2 sm:$0xff]
        %s335 = scalar_lea.vmem %s325, 240
        %v336 = vld [vmem:[%s335] ss:$2 sm:$0xff]
        %s337 = scalar_lea.vmem %s325, 288
        %v338 = vld [vmem:[%s337] ss:$2 sm:$0xff]
        %s339 = scalar_lea.vmem %s325, 336
        %v340 = vld [vmem:[%s339] ss:$2 sm:$0xff]
        %v341 = vld [vmem:[%s299] ss:$2 sm:$0xff]
        %s342 = scalar_lea.vmem %s282, 48
        %v343 = vld [vmem:[%s342] ss:$2 sm:$0xff]
        %s344 = scalar_lea.vmem %s342, 48
        %v345 = vld [vmem:[%s344] ss:$2 sm:$0xff]
        %s346 = scalar_lea.vmem %s342, 96
        %v347 = vld [vmem:[%s346] ss:$2 sm:$0xff]
        %s348 = scalar_lea.vmem %s342, 144
        %v349 = vld [vmem:[%s348] ss:$2 sm:$0xff]
        %s350 = scalar_lea.vmem %s342, 192
        %v351 = vld [vmem:[%s350] ss:$2 sm:$0xff]
        %s352 = scalar_lea.vmem %s342, 240
        %v353 = vld [vmem:[%s352] ss:$2 sm:$0xff]
        %s354 = scalar_lea.vmem %s342, 288
        %v355 = vld [vmem:[%s354] ss:$2 sm:$0xff]
        %v356 = vld [vmem:[%s2] sm:$0xf]
        %vm357 = vcmask 31744
        %v359 = vsel %vm357, %v310, 0
        %v362 = vsel %vm357, %v312, 0
        %v365 = vsel %vm357, %v314, 0
        %v368 = vsel %vm357, %v316, 0
        %v371 = vsel %vm357, %v318, 0
        %v374 = vsel %vm357, %v320, 0
        %v377 = vsel %vm357, %v322, 0
        %v380 = vsel %vm357, %v324, 0
        %vm382 = vcmask 1043456
        %v384 = vsel %vm382, %v356, 0
        %386 = vmatprep.subr.mxu0 0.0
        %387 = vmatpush1.msra.mxu0 %v384
        %388 = vmatprep.subr.mxu0 0.0
        %389 = vmatpush1.msra.mxu0 0.0
        %390 = vmatprep.subr.mxu0 0.0
        %391 = vmatpush1.msra.mxu0 0.0
        %392 = vmatprep.subr.mxu0 0.0
        %393 = vmatpush1.msra.mxu0 0.0
        %394 = vmatprep.subr.mxu0 0.0
        %395 = vmatpush1.msra.mxu0 0.0
        %396 = vmatprep.subr.mxu0 0.0
        %397 = vmatpush1.msra.mxu0 0.0
        %398 = vmatprep.subr.mxu0 0.0
        %399 = vmatpush1.msra.mxu0 0.0
        %400 = vmatprep.subr.mxu0 0.0
        %401 = vmatpush1.msra.mxu0 0.0
        %402 = vmatprep.subr.mxu0 0.0
        %403 = vmatpush1.msra.mxu0 0.0
        %404 = vmatprep.subr.mxu0 0.0
        %405 = vmatpush1.msra.mxu0 0.0
        %406 = vmatprep.subr.mxu0 0.0
        %407 = vmatpush1.msra.mxu0 0.0
        %408 = vmatprep.subr.mxu0 0.0
        %409 = vmatpush1.msra.mxu0 0.0
        %410 = vmatprep.subr.mxu0 0.0
        %411 = vmatpush1.msra.mxu0 0.0
        %412 = vmatprep.subr.mxu0 0.0
        %413 = vmatpush1.msra.mxu0 0.0
        %414 = vmatprep.subr.mxu0 0.0
        %415 = vmatpush1.msra.mxu0 0.0
        %416 = vmatprep.subr.mxu0 0.0
        %417 = vmatpush1.msra.mxu0 0.0
        %418 = vmatprep.subr.mxu0 0.0
        %419 = vmatpush1.msra.mxu0 0.0
        %420 = vmatprep.subr.mxu0 0.0
        %421 = vmatpush1.msra.mxu0 0.0
        %422 = vmatprep.subr.mxu0 0.0
        %423 = vmatpush1.msra.mxu0 0.0
        %424 = vmatprep.subr.mxu0 0.0
        %425 = vmatpush1.msra.mxu0 0.0
        %426 = vmatprep.subr.mxu0 0.0
        %427 = vmatpush1.msra.mxu0 0.0
        %428 = vmatprep.subr.mxu0 0.0
        %429 = vmatpush1.msra.mxu0 0.0
        %430 = vmatprep.subr.mxu0 0.0
        %431 = vmatpush1.msra.mxu0 0.0
        %432 = vmatprep.subr.mxu0 0.0
        %433 = vmatpush1.msra.mxu0 0.0
        %434 = vmatprep.subr.mxu0 0.0
        %435 = vmatpush1.msra.mxu0 0.0
        %436 = vmatprep.subr.mxu0 0.0
        %437 = vmatpush1.msra.mxu0 0.0
        %438 = vmatprep.subr.mxu0 0.0
        %439 = vmatpush1.msra.mxu0 0.0
        %440 = vmatprep.subr.mxu0 0.0
        %441 = vmatpush1.msra.mxu0 0.0
        %442 = vmatprep.subr.mxu0 0.0
        %443 = vmatpush1.msra.mxu0 0.0
        %444 = vmatprep.subr.mxu0 0.0
        %445 = vmatpush1.msra.mxu0 0.0
        %446 = vmatprep.subr.mxu0 0.0
        %447 = vmatpush1.msra.mxu0 0.0
        %448 = vmatprep.subr.mxu0 0.0
        %449 = vmatpush1.msra.mxu0 0.0
        %450 = vmatprep.mubr.f32.mxu0 0.0
        %451 = vmatmul.mubr.f32.gmra.mrb[0].mxu0 %v359
        %v452 = vpop.f32.mrb[0].mxu0
        %v453 = vadd.f32 0.0, %v452
        %v454 = vpop.f32.mrb[0].mxu0
        %455 = vmatprep.mubr.f32.mxu0 0.0
        %456 = vmatmul.mubr.f32.gmra.mrb[0].mxu0 %v362
        %v457 = vpop.f32.mrb[0].mxu0
        %v458 = vadd.f32 0.0, %v457
        %v459 = vpop.f32.mrb[0].mxu0
        %460 = vmatprep.mubr.f32.mxu0 0.0
        %461 = vmatmul.mubr.f32.gmra.mrb[0].mxu0 %v365
        %v462 = vpop.f32.mrb[0].mxu0
        %v463 = vadd.f32 0.0, %v462
        %v464 = vpop.f32.mrb[0].mxu0
        %465 = vmatprep.mubr.f32.mxu0 0.0
        %466 = vmatmul.mubr.f32.gmra.mrb[0].mxu0 %v368
        %v467 = vpop.f32.mrb[0].mxu0
        %v468 = vadd.f32 0.0, %v467
        %v469 = vpop.f32.mrb[0].mxu0
        %470 = vmatprep.mubr.f32.mxu0 0.0
        %471 = vmatmul.mubr.f32.gmra.mrb[0].mxu0 %v371
        %v472 = vpop.f32.mrb[0].mxu0
        %v473 = vadd.f32 0.0, %v472
        %v474 = vpop.f32.mrb[0].mxu0
        %475 = vmatprep.mubr.f32.mxu0 0.0
        %476 = vmatmul.mubr.f32.gmra.mrb[0].mxu0 %v374
        %v477 = vpop.f32.mrb[0].mxu0
        %v478 = vadd.f32 0.0, %v477
        %v479 = vpop.f32.mrb[0].mxu0
        %480 = vmatprep.mubr.f32.mxu0 0.0
        %481 = vmatmul.mubr.f32.gmra.mrb[0].mxu0 %v377
        %v482 = vpop.f32.mrb[0].mxu0
        %v483 = vadd.f32 0.0, %v482
        %v484 = vpop.f32.mrb[0].mxu0
        %485 = vmatprep.mubr.f32.mxu0 0.0
        %486 = vmatmul.mubr.f32.gmra.mrb[0].mxu0 %v380
        %v487 = vpop.f32.mrb[0].mxu0
        %v488 = vadd.f32 0.0, %v487
        %v489 = vpop.f32.mrb[0].mxu0
        %490 = vdwg.mxu0
        %v491 = vadd.f32 %v308, %v453
        %v492 = vadd.f32 %v308, %v458
        %v493 = vadd.f32 %v308, %v463
        %v494 = vadd.f32 %v308, %v468
        %v495 = vadd.f32 %v308, %v473
        %v496 = vadd.f32 %v308, %v478
        %v497 = vadd.f32 %v308, %v483
        %v498 = vadd.f32 %v308, %v488
        %s499 = scalar_lea.vmem %s2, 12
        %v500 = vld [vmem:[%s499] sm:$0xf]
        %v502 = vsel %vm357, %v326, 0
        %v505 = vsel %vm357, %v328, 0
        %v508 = vsel %vm357, %v330, 0
        %v511 = vsel %vm357, %v332, 0
        %v514 = vsel %vm357, %v334, 0
        %v517 = vsel %vm357, %v336, 0
        %v520 = vsel %vm357, %v338, 0
        %v523 = vsel %vm357, %v340, 0
        %v526 = vsel %vm382, %v500, 0
        %528 = vmatprep.subr.mxu0 0.0
        %529 = vmatpush1.msra.mxu0 %v526
        %530 = vmatprep.subr.mxu0 0.0
        %531 = vmatpush1.msra.mxu0 0.0
        %532 = vmatprep.subr.mxu0 0.0
        %533 = vmatpush1.msra.mxu0 0.0
        %534 = vmatprep.subr.mxu0 0.0
        %535 = vmatpush1.msra.mxu0 0.0
        %536 = vmatprep.subr.mxu0 0.0
        %537 = vmatpush1.msra.mxu0 0.0
        %538 = vmatprep.subr.mxu0 0.0
        %539 = vmatpush1.msra.mxu0 0.0
        %540 = vmatprep.subr.mxu0 0.0
        %541 = vmatpush1.msra.mxu0 0.0
        %542 = vmatprep.subr.mxu0 0.0
        %543 = vmatpush1.msra.mxu0 0.0
        %544 = vmatprep.subr.mxu0 0.0
        %545 = vmatpush1.msra.mxu0 0.0
        %546 = vmatprep.subr.mxu0 0.0
        %547 = vmatpush1.msra.mxu0 0.0
        %548 = vmatprep.subr.mxu0 0.0
        %549 = vmatpush1.msra.mxu0 0.0
        %550 = vmatprep.subr.mxu0 0.0
        %551 = vmatpush1.msra.mxu0 0.0
        %552 = vmatprep.subr.mxu0 0.0
        %553 = vmatpush1.msra.mxu0 0.0
        %554 = vmatprep.subr.mxu0 0.0
        %555 = vmatpush1.msra.mxu0 0.0
        %556 = vmatprep.subr.mxu0 0.0
        %557 = vmatpush1.msra.mxu0 0.0
        %558 = vmatprep.subr.mxu0 0.0
        %559 = vmatpush1.msra.mxu0 0.0
        %560 = vmatprep.subr.mxu0 0.0
        %561 = vmatpush1.msra.mxu0 0.0
        %562 = vmatprep.subr.mxu0 0.0
        %563 = vmatpush1.msra.mxu0 0.0
        %564 = vmatprep.subr.mxu0 0.0
        %565 = vmatpush1.msra.mxu0 0.0
        %566 = vmatprep.subr.mxu0 0.0
        %567 = vmatpush1.msra.mxu0 0.0
        %568 = vmatprep.subr.mxu0 0.0
        %569 = vmatpush1.msra.mxu0 0.0
        %570 = vmatprep.subr.mxu0 0.0
        %571 = vmatpush1.msra.mxu0 0.0
        %572 = vmatprep.subr.mxu0 0.0
        %573 = vmatpush1.msra.mxu0 0.0
        %574 = vmatprep.subr.mxu0 0.0
        %575 = vmatpush1.msra.mxu0 0.0
        %576 = vmatprep.subr.mxu0 0.0
        %577 = vmatpush1.msra.mxu0 0.0
        %578 = vmatprep.subr.mxu0 0.0
        %579 = vmatpush1.msra.mxu0 0.0
        %580 = vmatprep.subr.mxu0 0.0
        %581 = vmatpush1.msra.mxu0 0.0
        %582 = vmatprep.subr.mxu0 0.0
        %583 = vmatpush1.msra.mxu0 0.0
        %584 = vmatprep.subr.mxu0 0.0
        %585 = vmatpush1.msra.mxu0 0.0
        %586 = vmatprep.subr.mxu0 0.0
        %587 = vmatpush1.msra.mxu0 0.0
        %588 = vmatprep.subr.mxu0 0.0
        %589 = vmatpush1.msra.mxu0 0.0
        %590 = vmatprep.subr.mxu0 0.0
        %591 = vmatpush1.msra.mxu0 0.0
        %592 = vmatprep.mubr.f32.mxu0 0.0
        %593 = vmatmul.mubr.f32.gmra.mrb[0].mxu0 %v502
        %v594 = vpop.f32.mrb[0].mxu0
        %v595 = vadd.f32 0.0, %v594
        %v596 = vpop.f32.mrb[0].mxu0
        %597 = vmatprep.mubr.f32.mxu0 0.0
        %598 = vmatmul.mubr.f32.gmra.mrb[0].mxu0 %v505
        %v599 = vpop.f32.mrb[0].mxu0
        %v600 = vadd.f32 0.0, %v599
        %v601 = vpop.f32.mrb[0].mxu0
        %602 = vmatprep.mubr.f32.mxu0 0.0
        %603 = vmatmul.mubr.f32.gmra.mrb[0].mxu0 %v508
        %v604 = vpop.f32.mrb[0].mxu0
        %v605 = vadd.f32 0.0, %v604
        %v606 = vpop.f32.mrb[0].mxu0
        %607 = vmatprep.mubr.f32.mxu0 0.0
        %608 = vmatmul.mubr.f32.gmra.mrb[0].mxu0 %v511
        %v609 = vpop.f32.mrb[0].mxu0
        %v610 = vadd.f32 0.0, %v609
        %v611 = vpop.f32.mrb[0].mxu0
        %612 = vmatprep.mubr.f32.mxu0 0.0
        %613 = vmatmul.mubr.f32.gmra.mrb[0].mxu0 %v514
        %v614 = vpop.f32.mrb[0].mxu0
        %v615 = vadd.f32 0.0, %v614
        %v616 = vpop.f32.mrb[0].mxu0
        %617 = vmatprep.mubr.f32.mxu0 0.0
        %618 = vmatmul.mubr.f32.gmra.mrb[0].mxu0 %v517
        %v619 = vpop.f32.mrb[0].mxu0
        %v620 = vadd.f32 0.0, %v619
        %v621 = vpop.f32.mrb[0].mxu0
        %622 = vmatprep.mubr.f32.mxu0 0.0
        %623 = vmatmul.mubr.f32.gmra.mrb[0].mxu0 %v520
        %v624 = vpop.f32.mrb[0].mxu0
        %v625 = vadd.f32 0.0, %v624
        %v626 = vpop.f32.mrb[0].mxu0
        %627 = vmatprep.mubr.f32.mxu0 0.0
        %628 = vmatmul.mubr.f32.gmra.mrb[0].mxu0 %v523
        %v629 = vpop.f32.mrb[0].mxu0
        %v630 = vadd.f32 0.0, %v629
        %v631 = vpop.f32.mrb[0].mxu0
        %632 = vdwg.mxu0
        %v633 = vadd.f32 %v491, %v595
        %v634 = vadd.f32 %v492, %v600
        %v635 = vadd.f32 %v493, %v605
        %v636 = vadd.f32 %v494, %v610
        %v637 = vadd.f32 %v495, %v615
        %v638 = vadd.f32 %v496, %v620
        %v639 = vadd.f32 %v497, %v625
        %v640 = vadd.f32 %v498, %v630
        %s641 = scalar_lea.vmem %s2, 24
        %v642 = vld [vmem:[%s641] sm:$0xf]
        %v644 = vsel %vm357, %v343, 0
        %v647 = vsel %vm357, %v345, 0
        %v650 = vsel %vm357, %v347, 0
        %v653 = vsel %vm357, %v349, 0
        %v656 = vsel %vm357, %v351, 0
        %v659 = vsel %vm357, %v353, 0
        %v662 = vsel %vm357, %v355, 0
        %v665 = vsel %vm357, %v341, 0
        %v668 = vsel %vm382, %v642, 0
        %670 = vmatprep.subr.mxu0 0.0
        %671 = vmatpush1.msra.mxu0 %v668
        %672 = vmatprep.subr.mxu0 0.0
        %673 = vmatpush1.msra.mxu0 0.0
        %674 = vmatprep.subr.mxu0 0.0
        %675 = vmatpush1.msra.mxu0 0.0
        %676 = vmatprep.subr.mxu0 0.0
        %677 = vmatpush1.msra.mxu0 0.0
        %678 = vmatprep.subr.mxu0 0.0
        %679 = vmatpush1.msra.mxu0 0.0
        %680 = vmatprep.subr.mxu0 0.0
        %681 = vmatpush1.msra.mxu0 0.0
        %682 = vmatprep.subr.mxu0 0.0
        %683 = vmatpush1.msra.mxu0 0.0
        %684 = vmatprep.subr.mxu0 0.0
        %685 = vmatpush1.msra.mxu0 0.0
        %686 = vmatprep.subr.mxu0 0.0
        %687 = vmatpush1.msra.mxu0 0.0
        %688 = vmatprep.subr.mxu0 0.0
        %689 = vmatpush1.msra.mxu0 0.0
        %690 = vmatprep.subr.mxu0 0.0
        %691 = vmatpush1.msra.mxu0 0.0
        %692 = vmatprep.subr.mxu0 0.0
        %693 = vmatpush1.msra.mxu0 0.0
        %694 = vmatprep.subr.mxu0 0.0
        %695 = vmatpush1.msra.mxu0 0.0
        %696 = vmatprep.subr.mxu0 0.0
        %697 = vmatpush1.msra.mxu0 0.0
        %698 = vmatprep.subr.mxu0 0.0
        %699 = vmatpush1.msra.mxu0 0.0
        %700 = vmatprep.subr.mxu0 0.0
        %701 = vmatpush1.msra.mxu0 0.0
        %702 = vmatprep.subr.mxu0 0.0
        %703 = vmatpush1.msra.mxu0 0.0
        %704 = vmatprep.subr.mxu0 0.0
        %705 = vmatpush1.msra.mxu0 0.0
        %706 = vmatprep.subr.mxu0 0.0
        %707 = vmatpush1.msra.mxu0 0.0
        %708 = vmatprep.subr.mxu0 0.0
        %709 = vmatpush1.msra.mxu0 0.0
        %710 = vmatprep.subr.mxu0 0.0
        %711 = vmatpush1.msra.mxu0 0.0
        %712 = vmatprep.subr.mxu0 0.0
        %713 = vmatpush1.msra.mxu0 0.0
        %714 = vmatprep.subr.mxu0 0.0
        %715 = vmatpush1.msra.mxu0 0.0
        %716 = vmatprep.subr.mxu0 0.0
        %717 = vmatpush1.msra.mxu0 0.0
        %718 = vmatprep.subr.mxu0 0.0
        %719 = vmatpush1.msra.mxu0 0.0
        %720 = vmatprep.subr.mxu0 0.0
        %721 = vmatpush1.msra.mxu0 0.0
        %722 = vmatprep.subr.mxu0 0.0
        %723 = vmatpush1.msra.mxu0 0.0
        %724 = vmatprep.subr.mxu0 0.0
        %725 = vmatpush1.msra.mxu0 0.0
        %726 = vmatprep.subr.mxu0 0.0
        %727 = vmatpush1.msra.mxu0 0.0
        %728 = vmatprep.subr.mxu0 0.0
        %729 = vmatpush1.msra.mxu0 0.0
        %730 = vmatprep.subr.mxu0 0.0
        %731 = vmatpush1.msra.mxu0 0.0
        %732 = vmatprep.subr.mxu0 0.0
        %733 = vmatpush1.msra.mxu0 0.0
        %734 = vmatprep.mubr.f32.mxu0 0.0
        %735 = vmatmul.mubr.f32.gmra.mrb[0].mxu0 %v644
        %v736 = vpop.f32.mrb[0].mxu0
        %v737 = vadd.f32 0.0, %v736
        %v738 = vpop.f32.mrb[0].mxu0
        %739 = vmatprep.mubr.f32.mxu0 0.0
        %740 = vmatmul.mubr.f32.gmra.mrb[0].mxu0 %v647
        %v741 = vpop.f32.mrb[0].mxu0
        %v742 = vadd.f32 0.0, %v741
        %v743 = vpop.f32.mrb[0].mxu0
        %744 = vmatprep.mubr.f32.mxu0 0.0
        %745 = vmatmul.mubr.f32.gmra.mrb[0].mxu0 %v650
        %v746 = vpop.f32.mrb[0].mxu0
        %v747 = vadd.f32 0.0, %v746
        %v748 = vpop.f32.mrb[0].mxu0
        %749 = vmatprep.mubr.f32.mxu0 0.0
        %750 = vmatmul.mubr.f32.gmra.mrb[0].mxu0 %v653
        %v751 = vpop.f32.mrb[0].mxu0
        %v752 = vadd.f32 0.0, %v751
        %v753 = vpop.f32.mrb[0].mxu0
        %754 = vmatprep.mubr.f32.mxu0 0.0
        %755 = vmatmul.mubr.f32.gmra.mrb[0].mxu0 %v656
        %v756 = vpop.f32.mrb[0].mxu0
        %v757 = vadd.f32 0.0, %v756
        %v758 = vpop.f32.mrb[0].mxu0
        %759 = vmatprep.mubr.f32.mxu0 0.0
        %760 = vmatmul.mubr.f32.gmra.mrb[0].mxu0 %v659
        %v761 = vpop.f32.mrb[0].mxu0
        %v762 = vadd.f32 0.0, %v761
        %v763 = vpop.f32.mrb[0].mxu0
        %764 = vmatprep.mubr.f32.mxu0 0.0
        %765 = vmatmul.mubr.f32.gmra.mrb[0].mxu0 %v662
        %v766 = vpop.f32.mrb[0].mxu0
        %v767 = vadd.f32 0.0, %v766
        %v768 = vpop.f32.mrb[0].mxu0
        %769 = vmatprep.mubr.f32.mxu0 0.0
        %770 = vmatmul.mubr.f32.gmra.mrb[0].mxu0 %v665
        %v771 = vpop.f32.mrb[0].mxu0
        %v772 = vadd.f32 0.0, %v771
        %v773 = vpop.f32.mrb[0].mxu0
        %774 = vdwg.mxu0
        %v775 = vadd.f32 %v633, %v737
        %v776 = vadd.f32 %v634, %v742
        %v777 = vadd.f32 %v635, %v747
        %v778 = vadd.f32 %v636, %v752
        %v779 = vadd.f32 %v637, %v757
        %v780 = vadd.f32 %v638, %v762
        %v781 = vadd.f32 %v639, %v767
        %v782 = vadd.f32 %v640, %v772
        %s783 = scalar_lea.vmem %s282, 1
        %v784 = vld [vmem:[%s783] ss:$2 sm:$0xff]
        %s785 = scalar_lea.vmem %s282, 49
        %v786 = vld [vmem:[%s785] ss:$2 sm:$0xff]
        %s787 = scalar_lea.vmem %s282, 97
        %v788 = vld [vmem:[%s787] ss:$2 sm:$0xff]
        %s789 = scalar_lea.vmem %s282, 145
        %v790 = vld [vmem:[%s789] ss:$2 sm:$0xff]
        %s791 = scalar_lea.vmem %s282, 193
        %v792 = vld [vmem:[%s791] ss:$2 sm:$0xff]
        %s793 = scalar_lea.vmem %s282, 241
        %v794 = vld [vmem:[%s793] ss:$2 sm:$0xff]
        %s795 = scalar_lea.vmem %s282, 289
        %v796 = vld [vmem:[%s795] ss:$2 sm:$0xff]
        %s797 = scalar_lea.vmem %s282, 337
        %v798 = vld [vmem:[%s797] ss:$2 sm:$0xff]
        %s799 = scalar_lea.vmem %s325, 1
        %v800 = vld [vmem:[%s799] ss:$2 sm:$0xff]
        %s801 = scalar_lea.vmem %s325, 49
        %v802 = vld [vmem:[%s801] ss:$2 sm:$0xff]
        %s803 = scalar_lea.vmem %s325, 97
        %v804 = vld [vmem:[%s803] ss:$2 sm:$0xff]
        %s805 = scalar_lea.vmem %s325, 145
        %v806 = vld [vmem:[%s805] ss:$2 sm:$0xff]
        %s807 = scalar_lea.vmem %s325, 193
        %v808 = vld [vmem:[%s807] ss:$2 sm:$0xff]
        %s809 = scalar_lea.vmem %s325, 241
        %v810 = vld [vmem:[%s809] ss:$2 sm:$0xff]
        %s811 = scalar_lea.vmem %s325, 289
        %v812 = vld [vmem:[%s811] ss:$2 sm:$0xff]
        %s813 = scalar_lea.vmem %s325, 337
        %v814 = vld [vmem:[%s813] ss:$2 sm:$0xff]
        %s815 = scalar_lea.vmem %s299, 1
        %v816 = vld [vmem:[%s815] ss:$2 sm:$0xff]
        %s817 = scalar_lea.vmem %s342, 1
        %v818 = vld [vmem:[%s817] ss:$2 sm:$0xff]
        %s819 = scalar_lea.vmem %s342, 49
        %v820 = vld [vmem:[%s819] ss:$2 sm:$0xff]
        %s821 = scalar_lea.vmem %s342, 97
        %v822 = vld [vmem:[%s821] ss:$2 sm:$0xff]
        %s823 = scalar_lea.vmem %s342, 145
        %v824 = vld [vmem:[%s823] ss:$2 sm:$0xff]
        %s825 = scalar_lea.vmem %s342, 193
        %v826 = vld [vmem:[%s825] ss:$2 sm:$0xff]
        %s827 = scalar_lea.vmem %s342, 241
        %v828 = vld [vmem:[%s827] ss:$2 sm:$0xff]
        %s829 = scalar_lea.vmem %s342, 289
        %v830 = vld [vmem:[%s829] ss:$2 sm:$0xff]
        %s831 = scalar_lea.vmem %s2, 4
        %v832 = vld [vmem:[%s831] sm:$0xf]
        %v834 = vsel %vm357, %v784, 0
        %v837 = vsel %vm357, %v786, 0
        %v840 = vsel %vm357, %v788, 0
        %v843 = vsel %vm357, %v790, 0
        %v846 = vsel %vm357, %v792, 0
        %v849 = vsel %vm357, %v794, 0
        %v852 = vsel %vm357, %v796, 0
        %v855 = vsel %vm357, %v798, 0
        %v858 = vsel %vm382, %v832, 0
        %860 = vmatprep.subr.mxu0 0.0
        %861 = vmatpush1.msra.mxu0 %v858
        %862 = vmatprep.subr.mxu0 0.0
        %863 = vmatpush1.msra.mxu0 0.0
        %864 = vmatprep.subr.mxu0 0.0
        %865 = vmatpush1.msra.mxu0 0.0
        %866 = vmatprep.subr.mxu0 0.0
        %867 = vmatpush1.msra.mxu0 0.0
        %868 = vmatprep.subr.mxu0 0.0
        %869 = vmatpush1.msra.mxu0 0.0
        %870 = vmatprep.subr.mxu0 0.0
        %871 = vmatpush1.msra.mxu0 0.0
        %872 = vmatprep.subr.mxu0 0.0
        %873 = vmatpush1.msra.mxu0 0.0
        %874 = vmatprep.subr.mxu0 0.0
        %875 = vmatpush1.msra.mxu0 0.0
        %876 = vmatprep.subr.mxu0 0.0
        %877 = vmatpush1.msra.mxu0 0.0
        %878 = vmatprep.subr.mxu0 0.0
        %879 = vmatpush1.msra.mxu0 0.0
        %880 = vmatprep.subr.mxu0 0.0
        %881 = vmatpush1.msra.mxu0 0.0
        %882 = vmatprep.subr.mxu0 0.0
        %883 = vmatpush1.msra.mxu0 0.0
        %884 = vmatprep.subr.mxu0 0.0
        %885 = vmatpush1.msra.mxu0 0.0
        %886 = vmatprep.subr.mxu0 0.0
        %887 = vmatpush1.msra.mxu0 0.0
        %888 = vmatprep.subr.mxu0 0.0
        %889 = vmatpush1.msra.mxu0 0.0
        %890 = vmatprep.subr.mxu0 0.0
        %891 = vmatpush1.msra.mxu0 0.0
        %892 = vmatprep.subr.mxu0 0.0
        %893 = vmatpush1.msra.mxu0 0.0
        %894 = vmatprep.subr.mxu0 0.0
        %895 = vmatpush1.msra.mxu0 0.0
        %896 = vmatprep.subr.mxu0 0.0
        %897 = vmatpush1.msra.mxu0 0.0
        %898 = vmatprep.subr.mxu0 0.0
        %899 = vmatpush1.msra.mxu0 0.0
        %900 = vmatprep.subr.mxu0 0.0
        %901 = vmatpush1.msra.mxu0 0.0
        %902 = vmatprep.subr.mxu0 0.0
        %903 = vmatpush1.msra.mxu0 0.0
        %904 = vmatprep.subr.mxu0 0.0
        %905 = vmatpush1.msra.mxu0 0.0
        %906 = vmatprep.subr.mxu0 0.0
        %907 = vmatpush1.msra.mxu0 0.0
        %908 = vmatprep.subr.mxu0 0.0
        %909 = vmatpush1.msra.mxu0 0.0
        %910 = vmatprep.subr.mxu0 0.0
        %911 = vmatpush1.msra.mxu0 0.0
        %912 = vmatprep.subr.mxu0 0.0
        %913 = vmatpush1.msra.mxu0 0.0
        %914 = vmatprep.subr.mxu0 0.0
        %915 = vmatpush1.msra.mxu0 0.0
        %916 = vmatprep.subr.mxu0 0.0
        %917 = vmatpush1.msra.mxu0 0.0
        %918 = vmatprep.subr.mxu0 0.0
        %919 = vmatpush1.msra.mxu0 0.0
        %920 = vmatprep.subr.mxu0 0.0
        %921 = vmatpush1.msra.mxu0 0.0
        %922 = vmatprep.subr.mxu0 0.0
        %923 = vmatpush1.msra.mxu0 0.0
        %924 = vmatprep.mubr.f32.mxu0 0.0
        %925 = vmatmul.mubr.f32.gmra.mrb[0].mxu0 %v834
        %v926 = vpop.f32.mrb[0].mxu0
        %v927 = vadd.f32 0.0, %v926
        %v928 = vpop.f32.mrb[0].mxu0
        %929 = vmatprep.mubr.f32.mxu0 0.0
        %930 = vmatmul.mubr.f32.gmra.mrb[0].mxu0 %v837
        %v931 = vpop.f32.mrb[0].mxu0
        %v932 = vadd.f32 0.0, %v931
        %v933 = vpop.f32.mrb[0].mxu0
        %934 = vmatprep.mubr.f32.mxu0 0.0
        %935 = vmatmul.mubr.f32.gmra.mrb[0].mxu0 %v840
        %v936 = vpop.f32.mrb[0].mxu0
        %v937 = vadd.f32 0.0, %v936
        %v938 = vpop.f32.mrb[0].mxu0
        %939 = vmatprep.mubr.f32.mxu0 0.0
        %940 = vmatmul.mubr.f32.gmra.mrb[0].mxu0 %v843
        %v941 = vpop.f32.mrb[0].mxu0
        %v942 = vadd.f32 0.0, %v941
        %v943 = vpop.f32.mrb[0].mxu0
        %944 = vmatprep.mubr.f32.mxu0 0.0
        %945 = vmatmul.mubr.f32.gmra.mrb[0].mxu0 %v846
        %v946 = vpop.f32.mrb[0].mxu0
        %v947 = vadd.f32 0.0, %v946
        %v948 = vpop.f32.mrb[0].mxu0
        %949 = vmatprep.mubr.f32.mxu0 0.0
        %950 = vmatmul.mubr.f32.gmra.mrb[0].mxu0 %v849
        %v951 = vpop.f32.mrb[0].mxu0
        %v952 = vadd.f32 0.0, %v951
        %v953 = vpop.f32.mrb[0].mxu0
        %954 = vmatprep.mubr.f32.mxu0 0.0
        %955 = vmatmul.mubr.f32.gmra.mrb[0].mxu0 %v852
        %v956 = vpop.f32.mrb[0].mxu0
        %v957 = vadd.f32 0.0, %v956
        %v958 = vpop.f32.mrb[0].mxu0
        %959 = vmatprep.mubr.f32.mxu0 0.0
        %960 = vmatmul.mubr.f32.gmra.mrb[0].mxu0 %v855
        %v961 = vpop.f32.mrb[0].mxu0
        %v962 = vadd.f32 0.0, %v961
        %v963 = vpop.f32.mrb[0].mxu0
        %964 = vdwg.mxu0
        %v965 = vadd.f32 %v775, %v927
        %v966 = vadd.f32 %v776, %v932
        %v967 = vadd.f32 %v777, %v937
        %v968 = vadd.f32 %v778, %v942
        %v969 = vadd.f32 %v779, %v947
        %v970 = vadd.f32 %v780, %v952
        %v971 = vadd.f32 %v781, %v957
        %v972 = vadd.f32 %v782, %v962
        %s973 = scalar_lea.vmem %s2, 16
        %v974 = vld [vmem:[%s973] sm:$0xf]
        %v976 = vsel %vm357, %v800, 0
        %v979 = vsel %vm357, %v802, 0
        %v982 = vsel %vm357, %v804, 0
        %v985 = vsel %vm357, %v806, 0
        %v988 = vsel %vm357, %v808, 0
        %v991 = vsel %vm357, %v810, 0
        %v994 = vsel %vm357, %v812, 0
        %v997 = vsel %vm357, %v814, 0
        %v1000 = vsel %vm382, %v974, 0
        %1002 = vmatprep.subr.mxu0 0.0
        %1003 = vmatpush1.msra.mxu0 %v1000
        %1004 = vmatprep.subr.mxu0 0.0
        %1005 = vmatpush1.msra.mxu0 0.0
        %1006 = vmatprep.subr.mxu0 0.0
        %1007 = vmatpush1.msra.mxu0 0.0
        %1008 = vmatprep.subr.mxu0 0.0
        %1009 = vmatpush1.msra.mxu0 0.0
        %1010 = vmatprep.subr.mxu0 0.0
        %1011 = vmatpush1.msra.mxu0 0.0
        %1012 = vmatprep.subr.mxu0 0.0
        %1013 = vmatpush1.msra.mxu0 0.0
        %1014 = vmatprep.subr.mxu0 0.0
        %1015 = vmatpush1.msra.mxu0 0.0
        %1016 = vmatprep.subr.mxu0 0.0
        %1017 = vmatpush1.msra.mxu0 0.0
        %1018 = vmatprep.subr.mxu0 0.0
        %1019 = vmatpush1.msra.mxu0 0.0
        %1020 = vmatprep.subr.mxu0 0.0
        %1021 = vmatpush1.msra.mxu0 0.0
        %1022 = vmatprep.subr.mxu0 0.0
        %1023 = vmatpush1.msra.mxu0 0.0
        %1024 = vmatprep.subr.mxu0 0.0
        %1025 = vmatpush1.msra.mxu0 0.0
        %1026 = vmatprep.subr.mxu0 0.0
        %1027 = vmatpush1.msra.mxu0 0.0
        %1028 = vmatprep.subr.mxu0 0.0
        %1029 = vmatpush1.msra.mxu0 0.0
        %1030 = vmatprep.subr.mxu0 0.0
        %1031 = vmatpush1.msra.mxu0 0.0
        %1032 = vmatprep.subr.mxu0 0.0
        %1033 = vmatpush1.msra.mxu0 0.0
        %1034 = vmatprep.subr.mxu0 0.0
        %1035 = vmatpush1.msra.mxu0 0.0
        %1036 = vmatprep.subr.mxu0 0.0
        %1037 = vmatpush1.msra.mxu0 0.0
        %1038 = vmatprep.subr.mxu0 0.0
        %1039 = vmatpush1.msra.mxu0 0.0
        %1040 = vmatprep.subr.mxu0 0.0
        %1041 = vmatpush1.msra.mxu0 0.0
        %1042 = vmatprep.subr.mxu0 0.0
        %1043 = vmatpush1.msra.mxu0 0.0
        %1044 = vmatprep.subr.mxu0 0.0
        %1045 = vmatpush1.msra.mxu0 0.0
        %1046 = vmatprep.subr.mxu0 0.0
        %1047 = vmatpush1.msra.mxu0 0.0
        %1048 = vmatprep.subr.mxu0 0.0
        %1049 = vmatpush1.msra.mxu0 0.0
        %1050 = vmatprep.subr.mxu0 0.0
        %1051 = vmatpush1.msra.mxu0 0.0
        %1052 = vmatprep.subr.mxu0 0.0
        %1053 = vmatpush1.msra.mxu0 0.0
        %1054 = vmatprep.subr.mxu0 0.0
        %1055 = vmatpush1.msra.mxu0 0.0
        %1056 = vmatprep.subr.mxu0 0.0
        %1057 = vmatpush1.msra.mxu0 0.0
        %1058 = vmatprep.subr.mxu0 0.0
        %1059 = vmatpush1.msra.mxu0 0.0
        %1060 = vmatprep.subr.mxu0 0.0
        %1061 = vmatpush1.msra.mxu0 0.0
        %1062 = vmatprep.subr.mxu0 0.0
        %1063 = vmatpush1.msra.mxu0 0.0
        %1064 = vmatprep.subr.mxu0 0.0
        %1065 = vmatpush1.msra.mxu0 0.0
        %1066 = vmatprep.mubr.f32.mxu0 0.0
        %1067 = vmatmul.mubr.f32.gmra.mrb[0].mxu0 %v976
        %v1068 = vpop.f32.mrb[0].mxu0
        %v1069 = vadd.f32 0.0, %v1068
        %v1070 = vpop.f32.mrb[0].mxu0
        %1071 = vmatprep.mubr.f32.mxu0 0.0
        %1072 = vmatmul.mubr.f32.gmra.mrb[0].mxu0 %v979
        %v1073 = vpop.f32.mrb[0].mxu0
        %v1074 = vadd.f32 0.0, %v1073
        %v1075 = vpop.f32.mrb[0].mxu0
        %1076 = vmatprep.mubr.f32.mxu0 0.0
        %1077 = vmatmul.mubr.f32.gmra.mrb[0].mxu0 %v982
        %v1078 = vpop.f32.mrb[0].mxu0
        %v1079 = vadd.f32 0.0, %v1078
        %v1080 = vpop.f32.mrb[0].mxu0
        %1081 = vmatprep.mubr.f32.mxu0 0.0
        %1082 = vmatmul.mubr.f32.gmra.mrb[0].mxu0 %v985
        %v1083 = vpop.f32.mrb[0].mxu0
        %v1084 = vadd.f32 0.0, %v1083
        %v1085 = vpop.f32.mrb[0].mxu0
        %1086 = vmatprep.mubr.f32.mxu0 0.0
        %1087 = vmatmul.mubr.f32.gmra.mrb[0].mxu0 %v988
        %v1088 = vpop.f32.mrb[0].mxu0
        %v1089 = vadd.f32 0.0, %v1088
        %v1090 = vpop.f32.mrb[0].mxu0
        %1091 = vmatprep.mubr.f32.mxu0 0.0
        %1092 = vmatmul.mubr.f32.gmra.mrb[0].mxu0 %v991
        %v1093 = vpop.f32.mrb[0].mxu0
        %v1094 = vadd.f32 0.0, %v1093
        %v1095 = vpop.f32.mrb[0].mxu0
        %1096 = vmatprep.mubr.f32.mxu0 0.0
        %1097 = vmatmul.mubr.f32.gmra.mrb[0].mxu0 %v994
        %v1098 = vpop.f32.mrb[0].mxu0
        %v1099 = vadd.f32 0.0, %v1098
        %v1100 = vpop.f32.mrb[0].mxu0
        %1101 = vmatprep.mubr.f32.mxu0 0.0
        %1102 = vmatmul.mubr.f32.gmra.mrb[0].mxu0 %v997
        %v1103 = vpop.f32.mrb[0].mxu0
        %v1104 = vadd.f32 0.0, %v1103
        %v1105 = vpop.f32.mrb[0].mxu0
        %1106 = vdwg.mxu0
        %v1107 = vadd.f32 %v965, %v1069
        %v1108 = vadd.f32 %v966, %v1074
        %v1109 = vadd.f32 %v967, %v1079
        %v1110 = vadd.f32 %v968, %v1084
        %v1111 = vadd.f32 %v969, %v1089
        %v1112 = vadd.f32 %v970, %v1094
        %v1113 = vadd.f32 %v971, %v1099
        %v1114 = vadd.f32 %v972, %v1104
        %s1115 = scalar_lea.vmem %s2, 28
        %v1116 = vld [vmem:[%s1115] sm:$0xf]
        %v1118 = vsel %vm357, %v818, 0
        %v1121 = vsel %vm357, %v820, 0
        %v1124 = vsel %vm357, %v822, 0
        %v1127 = vsel %vm357, %v824, 0
        %v1130 = vsel %vm357, %v826, 0
        %v1133 = vsel %vm357, %v828, 0
        %v1136 = vsel %vm357, %v830, 0
        %v1139 = vsel %vm357, %v816, 0
        %v1142 = vsel %vm382, %v1116, 0
        %1144 = vmatprep.subr.mxu0 0.0
        %1145 = vmatpush1.msra.mxu0 %v1142
        %1146 = vmatprep.subr.mxu0 0.0
        %1147 = vmatpush1.msra.mxu0 0.0
        %1148 = vmatprep.subr.mxu0 0.0
        %1149 = vmatpush1.msra.mxu0 0.0
        %1150 = vmatprep.subr.mxu0 0.0
        %1151 = vmatpush1.msra.mxu0 0.0
        %1152 = vmatprep.subr.mxu0 0.0
        %1153 = vmatpush1.msra.mxu0 0.0
        %1154 = vmatprep.subr.mxu0 0.0
        %1155 = vmatpush1.msra.mxu0 0.0
        %1156 = vmatprep.subr.mxu0 0.0
        %1157 = vmatpush1.msra.mxu0 0.0
        %1158 = vmatprep.subr.mxu0 0.0
        %1159 = vmatpush1.msra.mxu0 0.0
        %1160 = vmatprep.subr.mxu0 0.0
        %1161 = vmatpush1.msra.mxu0 0.0
        %1162 = vmatprep.subr.mxu0 0.0
        %1163 = vmatpush1.msra.mxu0 0.0
        %1164 = vmatprep.subr.mxu0 0.0
        %1165 = vmatpush1.msra.mxu0 0.0
        %1166 = vmatprep.subr.mxu0 0.0
        %1167 = vmatpush1.msra.mxu0 0.0
        %1168 = vmatprep.subr.mxu0 0.0
        %1169 = vmatpush1.msra.mxu0 0.0
        %1170 = vmatprep.subr.mxu0 0.0
        %1171 = vmatpush1.msra.mxu0 0.0
        %1172 = vmatprep.subr.mxu0 0.0
        %1173 = vmatpush1.msra.mxu0 0.0
        %1174 = vmatprep.subr.mxu0 0.0
        %1175 = vmatpush1.msra.mxu0 0.0
        %1176 = vmatprep.subr.mxu0 0.0
        %1177 = vmatpush1.msra.mxu0 0.0
        %1178 = vmatprep.subr.mxu0 0.0
        %1179 = vmatpush1.msra.mxu0 0.0
        %1180 = vmatprep.subr.mxu0 0.0
        %1181 = vmatpush1.msra.mxu0 0.0
        %1182 = vmatprep.subr.mxu0 0.0
        %1183 = vmatpush1.msra.mxu0 0.0
        %1184 = vmatprep.subr.mxu0 0.0
        %1185 = vmatpush1.msra.mxu0 0.0
        %1186 = vmatprep.subr.mxu0 0.0
        %1187 = vmatpush1.msra.mxu0 0.0
        %1188 = vmatprep.subr.mxu0 0.0
        %1189 = vmatpush1.msra.mxu0 0.0
        %1190 = vmatprep.subr.mxu0 0.0
        %1191 = vmatpush1.msra.mxu0 0.0
        %1192 = vmatprep.subr.mxu0 0.0
        %1193 = vmatpush1.msra.mxu0 0.0
        %1194 = vmatprep.subr.mxu0 0.0
        %1195 = vmatpush1.msra.mxu0 0.0
        %1196 = vmatprep.subr.mxu0 0.0
        %1197 = vmatpush1.msra.mxu0 0.0
        %1198 = vmatprep.subr.mxu0 0.0
        %1199 = vmatpush1.msra.mxu0 0.0
        %1200 = vmatprep.subr.mxu0 0.0
        %1201 = vmatpush1.msra.mxu0 0.0
        %1202 = vmatprep.subr.mxu0 0.0
        %1203 = vmatpush1.msra.mxu0 0.0
        %1204 = vmatprep.subr.mxu0 0.0
        %1205 = vmatpush1.msra.mxu0 0.0
        %1206 = vmatprep.subr.mxu0 0.0
        %1207 = vmatpush1.msra.mxu0 0.0
        %1208 = vmatprep.mubr.f32.mxu0 0.0
        %1209 = vmatmul.mubr.f32.gmra.mrb[0].mxu0 %v1118
        %v1210 = vpop.f32.mrb[0].mxu0
        %v1211 = vadd.f32 0.0, %v1210
        %v1212 = vpop.f32.mrb[0].mxu0
        %1213 = vmatprep.mubr.f32.mxu0 0.0
        %1214 = vmatmul.mubr.f32.gmra.mrb[0].mxu0 %v1121
        %v1215 = vpop.f32.mrb[0].mxu0
        %v1216 = vadd.f32 0.0, %v1215
        %v1217 = vpop.f32.mrb[0].mxu0
        %1218 = vmatprep.mubr.f32.mxu0 0.0
        %1219 = vmatmul.mubr.f32.gmra.mrb[0].mxu0 %v1124
        %v1220 = vpop.f32.mrb[0].mxu0
        %v1221 = vadd.f32 0.0, %v1220
        %v1222 = vpop.f32.mrb[0].mxu0
        %1223 = vmatprep.mubr.f32.mxu0 0.0
        %1224 = vmatmul.mubr.f32.gmra.mrb[0].mxu0 %v1127
        %v1225 = vpop.f32.mrb[0].mxu0
        %v1226 = vadd.f32 0.0, %v1225
        %v1227 = vpop.f32.mrb[0].mxu0
        %1228 = vmatprep.mubr.f32.mxu0 0.0
        %1229 = vmatmul.mubr.f32.gmra.mrb[0].mxu0 %v1130
        %v1230 = vpop.f32.mrb[0].mxu0
        %v1231 = vadd.f32 0.0, %v1230
        %v1232 = vpop.f32.mrb[0].mxu0
        %1233 = vmatprep.mubr.f32.mxu0 0.0
        %1234 = vmatmul.mubr.f32.gmra.mrb[0].mxu0 %v1133
        %v1235 = vpop.f32.mrb[0].mxu0
        %v1236 = vadd.f32 0.0, %v1235
        %v1237 = vpop.f32.mrb[0].mxu0
        %1238 = vmatprep.mubr.f32.mxu0 0.0
        %1239 = vmatmul.mubr.f32.gmra.mrb[0].mxu0 %v1136
        %v1240 = vpop.f32.mrb[0].mxu0
        %v1241 = vadd.f32 0.0, %v1240
        %v1242 = vpop.f32.mrb[0].mxu0
        %1243 = vmatprep.mubr.f32.mxu0 0.0
        %1244 = vmatmul.mubr.f32.gmra.mrb[0].mxu0 %v1139
        %v1245 = vpop.f32.mrb[0].mxu0
        %v1246 = vadd.f32 0.0, %v1245
        %v1247 = vpop.f32.mrb[0].mxu0
        %1248 = vdwg.mxu0
        %v1249 = vadd.f32 %v1107, %v1211
        %v1250 = vadd.f32 %v1108, %v1216
        %v1251 = vadd.f32 %v1109, %v1221
        %v1252 = vadd.f32 %v1110, %v1226
        %v1253 = vadd.f32 %v1111, %v1231
        %v1254 = vadd.f32 %v1112, %v1236
        %v1255 = vadd.f32 %v1113, %v1241
        %v1256 = vadd.f32 %v1114, %v1246
        %s1257 = scalar_lea.vmem %s282, 2
        %v1258 = vld [vmem:[%s1257] ss:$2 sm:$0xff]
        %s1259 = scalar_lea.vmem %s282, 50
        %v1260 = vld [vmem:[%s1259] ss:$2 sm:$0xff]
        %s1261 = scalar_lea.vmem %s282, 98
        %v1262 = vld [vmem:[%s1261] ss:$2 sm:$0xff]
        %s1263 = scalar_lea.vmem %s282, 146
        %v1264 = vld [vmem:[%s1263] ss:$2 sm:$0xff]
        %s1265 = scalar_lea.vmem %s282, 194
        %v1266 = vld [vmem:[%s1265] ss:$2 sm:$0xff]
        %s1267 = scalar_lea.vmem %s282, 242
        %v1268 = vld [vmem:[%s1267] ss:$2 sm:$0xff]
        %s1269 = scalar_lea.vmem %s282, 290
        %v1270 = vld [vmem:[%s1269] ss:$2 sm:$0xff]
        %s1271 = scalar_lea.vmem %s282, 338
        %v1272 = vld [vmem:[%s1271] ss:$2 sm:$0xff]
        %s1273 = scalar_lea.vmem %s325, 2
        %v1274 = vld [vmem:[%s1273] ss:$2 sm:$0xff]
        %s1275 = scalar_lea.vmem %s325, 50
        %v1276 = vld [vmem:[%s1275] ss:$2 sm:$0xff]
        %s1277 = scalar_lea.vmem %s325, 98
        %v1278 = vld [vmem:[%s1277] ss:$2 sm:$0xff]
        %s1279 = scalar_lea.vmem %s325, 146
        %v1280 = vld [vmem:[%s1279] ss:$2 sm:$0xff]
        %s1281 = scalar_lea.vmem %s325, 194
        %v1282 = vld [vmem:[%s1281] ss:$2 sm:$0xff]
        %s1283 = scalar_lea.vmem %s325, 242
        %v1284 = vld [vmem:[%s1283] ss:$2 sm:$0xff]
        %s1285 = scalar_lea.vmem %s325, 290
        %v1286 = vld [vmem:[%s1285] ss:$2 sm:$0xff]
        %s1287 = scalar_lea.vmem %s325, 338
        %v1288 = vld [vmem:[%s1287] ss:$2 sm:$0xff]
        %s1289 = scalar_lea.vmem %s299, 2
        %v1290 = vld [vmem:[%s1289] ss:$2 sm:$0xff]
        %s1291 = scalar_lea.vmem %s342, 2
        %v1292 = vld [vmem:[%s1291] ss:$2 sm:$0xff]
        %s1293 = scalar_lea.vmem %s342, 50
        %v1294 = vld [vmem:[%s1293] ss:$2 sm:$0xff]
        %s1295 = scalar_lea.vmem %s342, 98
        %v1296 = vld [vmem:[%s1295] ss:$2 sm:$0xff]
        %s1297 = scalar_lea.vmem %s342, 146
        %v1298 = vld [vmem:[%s1297] ss:$2 sm:$0xff]
        %s1299 = scalar_lea.vmem %s342, 194
        %v1300 = vld [vmem:[%s1299] ss:$2 sm:$0xff]
        %s1301 = scalar_lea.vmem %s342, 242
        %v1302 = vld [vmem:[%s1301] ss:$2 sm:$0xff]
        %s1303 = scalar_lea.vmem %s342, 290
        %v1304 = vld [vmem:[%s1303] ss:$2 sm:$0xff]
        %s1305 = scalar_lea.vmem %s2, 8
        %v1306 = vld [vmem:[%s1305] sm:$0xf]
        %v1308 = vsel %vm357, %v1258, 0
        %v1311 = vsel %vm357, %v1260, 0
        %v1314 = vsel %vm357, %v1262, 0
        %v1317 = vsel %vm357, %v1264, 0
        %v1320 = vsel %vm357, %v1266, 0
        %v1323 = vsel %vm357, %v1268, 0
        %v1326 = vsel %vm357, %v1270, 0
        %v1329 = vsel %vm357, %v1272, 0
        %v1332 = vsel %vm382, %v1306, 0
        %1334 = vmatprep.subr.mxu0 0.0
        %1335 = vmatpush1.msra.mxu0 %v1332
        %1336 = vmatprep.subr.mxu0 0.0
        %1337 = vmatpush1.msra.mxu0 0.0
        %1338 = vmatprep.subr.mxu0 0.0
        %1339 = vmatpush1.msra.mxu0 0.0
        %1340 = vmatprep.subr.mxu0 0.0
        %1341 = vmatpush1.msra.mxu0 0.0
        %1342 = vmatprep.subr.mxu0 0.0
        %1343 = vmatpush1.msra.mxu0 0.0
        %1344 = vmatprep.subr.mxu0 0.0
        %1345 = vmatpush1.msra.mxu0 0.0
        %1346 = vmatprep.subr.mxu0 0.0
        %1347 = vmatpush1.msra.mxu0 0.0
        %1348 = vmatprep.subr.mxu0 0.0
        %1349 = vmatpush1.msra.mxu0 0.0
        %1350 = vmatprep.subr.mxu0 0.0
        %1351 = vmatpush1.msra.mxu0 0.0
        %1352 = vmatprep.subr.mxu0 0.0
        %1353 = vmatpush1.msra.mxu0 0.0
        %1354 = vmatprep.subr.mxu0 0.0
        %1355 = vmatpush1.msra.mxu0 0.0
        %1356 = vmatprep.subr.mxu0 0.0
        %1357 = vmatpush1.msra.mxu0 0.0
        %1358 = vmatprep.subr.mxu0 0.0
        %1359 = vmatpush1.msra.mxu0 0.0
        %1360 = vmatprep.subr.mxu0 0.0
        %1361 = vmatpush1.msra.mxu0 0.0
        %1362 = vmatprep.subr.mxu0 0.0
        %1363 = vmatpush1.msra.mxu0 0.0
        %1364 = vmatprep.subr.mxu0 0.0
        %1365 = vmatpush1.msra.mxu0 0.0
        %1366 = vmatprep.subr.mxu0 0.0
        %1367 = vmatpush1.msra.mxu0 0.0
        %1368 = vmatprep.subr.mxu0 0.0
        %1369 = vmatpush1.msra.mxu0 0.0
        %1370 = vmatprep.subr.mxu0 0.0
        %1371 = vmatpush1.msra.mxu0 0.0
        %1372 = vmatprep.subr.mxu0 0.0
        %1373 = vmatpush1.msra.mxu0 0.0
        %1374 = vmatprep.subr.mxu0 0.0
        %1375 = vmatpush1.msra.mxu0 0.0
        %1376 = vmatprep.subr.mxu0 0.0
        %1377 = vmatpush1.msra.mxu0 0.0
        %1378 = vmatprep.subr.mxu0 0.0
        %1379 = vmatpush1.msra.mxu0 0.0
        %1380 = vmatprep.subr.mxu0 0.0
        %1381 = vmatpush1.msra.mxu0 0.0
        %1382 = vmatprep.subr.mxu0 0.0
        %1383 = vmatpush1.msra.mxu0 0.0
        %1384 = vmatprep.subr.mxu0 0.0
        %1385 = vmatpush1.msra.mxu0 0.0
        %1386 = vmatprep.subr.mxu0 0.0
        %1387 = vmatpush1.msra.mxu0 0.0
        %1388 = vmatprep.subr.mxu0 0.0
        %1389 = vmatpush1.msra.mxu0 0.0
        %1390 = vmatprep.subr.mxu0 0.0
        %1391 = vmatpush1.msra.mxu0 0.0
        %1392 = vmatprep.subr.mxu0 0.0
        %1393 = vmatpush1.msra.mxu0 0.0
        %1394 = vmatprep.subr.mxu0 0.0
        %1395 = vmatpush1.msra.mxu0 0.0
        %1396 = vmatprep.subr.mxu0 0.0
        %1397 = vmatpush1.msra.mxu0 0.0
        %1398 = vmatprep.mubr.f32.mxu0 0.0
        %1399 = vmatmul.mubr.f32.gmra.mrb[0].mxu0 %v1308
        %v1400 = vpop.f32.mrb[0].mxu0
        %v1401 = vadd.f32 0.0, %v1400
        %v1402 = vpop.f32.mrb[0].mxu0
        %1403 = vmatprep.mubr.f32.mxu0 0.0
        %1404 = vmatmul.mubr.f32.gmra.mrb[0].mxu0 %v1311
        %v1405 = vpop.f32.mrb[0].mxu0
        %v1406 = vadd.f32 0.0, %v1405
        %v1407 = vpop.f32.mrb[0].mxu0
        %1408 = vmatprep.mubr.f32.mxu0 0.0
        %1409 = vmatmul.mubr.f32.gmra.mrb[0].mxu0 %v1314
        %v1410 = vpop.f32.mrb[0].mxu0
        %v1411 = vadd.f32 0.0, %v1410
        %v1412 = vpop.f32.mrb[0].mxu0
        %1413 = vmatprep.mubr.f32.mxu0 0.0
        %1414 = vmatmul.mubr.f32.gmra.mrb[0].mxu0 %v1317
        %v1415 = vpop.f32.mrb[0].mxu0
        %v1416 = vadd.f32 0.0, %v1415
        %v1417 = vpop.f32.mrb[0].mxu0
        %1418 = vmatprep.mubr.f32.mxu0 0.0
        %1419 = vmatmul.mubr.f32.gmra.mrb[0].mxu0 %v1320
        %v1420 = vpop.f32.mrb[0].mxu0
        %v1421 = vadd.f32 0.0, %v1420
        %v1422 = vpop.f32.mrb[0].mxu0
        %1423 = vmatprep.mubr.f32.mxu0 0.0
        %1424 = vmatmul.mubr.f32.gmra.mrb[0].mxu0 %v1323
        %v1425 = vpop.f32.mrb[0].mxu0
        %v1426 = vadd.f32 0.0, %v1425
        %v1427 = vpop.f32.mrb[0].mxu0
        %1428 = vmatprep.mubr.f32.mxu0 0.0
        %1429 = vmatmul.mubr.f32.gmra.mrb[0].mxu0 %v1326
        %v1430 = vpop.f32.mrb[0].mxu0
        %v1431 = vadd.f32 0.0, %v1430
        %v1432 = vpop.f32.mrb[0].mxu0
        %1433 = vmatprep.mubr.f32.mxu0 0.0
        %1434 = vmatmul.mubr.f32.gmra.mrb[0].mxu0 %v1329
        %v1435 = vpop.f32.mrb[0].mxu0
        %v1436 = vadd.f32 0.0, %v1435
        %v1437 = vpop.f32.mrb[0].mxu0
        %1438 = vdwg.mxu0
        %v1439 = vadd.f32 %v1249, %v1401
        %v1440 = vadd.f32 %v1250, %v1406
        %v1441 = vadd.f32 %v1251, %v1411
        %v1442 = vadd.f32 %v1252, %v1416
        %v1443 = vadd.f32 %v1253, %v1421
        %v1444 = vadd.f32 %v1254, %v1426
        %v1445 = vadd.f32 %v1255, %v1431
        %v1446 = vadd.f32 %v1256, %v1436
        %s1447 = scalar_lea.vmem %s2, 20
        %v1448 = vld [vmem:[%s1447] sm:$0xf]
        %v1450 = vsel %vm357, %v1274, 0
        %v1453 = vsel %vm357, %v1276, 0
        %v1456 = vsel %vm357, %v1278, 0
        %v1459 = vsel %vm357, %v1280, 0
        %v1462 = vsel %vm357, %v1282, 0
        %v1465 = vsel %vm357, %v1284, 0
        %v1468 = vsel %vm357, %v1286, 0
        %v1471 = vsel %vm357, %v1288, 0
        %v1474 = vsel %vm382, %v1448, 0
        %1476 = vmatprep.subr.mxu0 0.0
        %1477 = vmatpush1.msra.mxu0 %v1474
        %1478 = vmatprep.subr.mxu0 0.0
        %1479 = vmatpush1.msra.mxu0 0.0
        %1480 = vmatprep.subr.mxu0 0.0
        %1481 = vmatpush1.msra.mxu0 0.0
        %1482 = vmatprep.subr.mxu0 0.0
        %1483 = vmatpush1.msra.mxu0 0.0
        %1484 = vmatprep.subr.mxu0 0.0
        %1485 = vmatpush1.msra.mxu0 0.0
        %1486 = vmatprep.subr.mxu0 0.0
        %1487 = vmatpush1.msra.mxu0 0.0
        %1488 = vmatprep.subr.mxu0 0.0
        %1489 = vmatpush1.msra.mxu0 0.0
        %1490 = vmatprep.subr.mxu0 0.0
        %1491 = vmatpush1.msra.mxu0 0.0
        %1492 = vmatprep.subr.mxu0 0.0
        %1493 = vmatpush1.msra.mxu0 0.0
        %1494 = vmatprep.subr.mxu0 0.0
        %1495 = vmatpush1.msra.mxu0 0.0
        %1496 = vmatprep.subr.mxu0 0.0
        %1497 = vmatpush1.msra.mxu0 0.0
        %1498 = vmatprep.subr.mxu0 0.0
        %1499 = vmatpush1.msra.mxu0 0.0
        %1500 = vmatprep.subr.mxu0 0.0
        %1501 = vmatpush1.msra.mxu0 0.0
        %1502 = vmatprep.subr.mxu0 0.0
        %1503 = vmatpush1.msra.mxu0 0.0
        %1504 = vmatprep.subr.mxu0 0.0
        %1505 = vmatpush1.msra.mxu0 0.0
        %1506 = vmatprep.subr.mxu0 0.0
        %1507 = vmatpush1.msra.mxu0 0.0
        %1508 = vmatprep.subr.mxu0 0.0
        %1509 = vmatpush1.msra.mxu0 0.0
        %1510 = vmatprep.subr.mxu0 0.0
        %1511 = vmatpush1.msra.mxu0 0.0
        %1512 = vmatprep.subr.mxu0 0.0
        %1513 = vmatpush1.msra.mxu0 0.0
        %1514 = vmatprep.subr.mxu0 0.0
        %1515 = vmatpush1.msra.mxu0 0.0
        %1516 = vmatprep.subr.mxu0 0.0
        %1517 = vmatpush1.msra.mxu0 0.0
        %1518 = vmatprep.subr.mxu0 0.0
        %1519 = vmatpush1.msra.mxu0 0.0
        %1520 = vmatprep.subr.mxu0 0.0
        %1521 = vmatpush1.msra.mxu0 0.0
        %1522 = vmatprep.subr.mxu0 0.0
        %1523 = vmatpush1.msra.mxu0 0.0
        %1524 = vmatprep.subr.mxu0 0.0
        %1525 = vmatpush1.msra.mxu0 0.0
        %1526 = vmatprep.subr.mxu0 0.0
        %1527 = vmatpush1.msra.mxu0 0.0
        %1528 = vmatprep.subr.mxu0 0.0
        %1529 = vmatpush1.msra.mxu0 0.0
        %1530 = vmatprep.subr.mxu0 0.0
        %1531 = vmatpush1.msra.mxu0 0.0
        %1532 = vmatprep.subr.mxu0 0.0
        %1533 = vmatpush1.msra.mxu0 0.0
        %1534 = vmatprep.subr.mxu0 0.0
        %1535 = vmatpush1.msra.mxu0 0.0
        %1536 = vmatprep.subr.mxu0 0.0
        %1537 = vmatpush1.msra.mxu0 0.0
        %1538 = vmatprep.subr.mxu0 0.0
        %1539 = vmatpush1.msra.mxu0 0.0
        %1540 = vmatprep.mubr.f32.mxu0 0.0
        %1541 = vmatmul.mubr.f32.gmra.mrb[0].mxu0 %v1450
        %v1542 = vpop.f32.mrb[0].mxu0
        %v1543 = vadd.f32 0.0, %v1542
        %v1544 = vpop.f32.mrb[0].mxu0
        %1545 = vmatprep.mubr.f32.mxu0 0.0
        %1546 = vmatmul.mubr.f32.gmra.mrb[0].mxu0 %v1453
        %v1547 = vpop.f32.mrb[0].mxu0
        %v1548 = vadd.f32 0.0, %v1547
        %v1549 = vpop.f32.mrb[0].mxu0
        %1550 = vmatprep.mubr.f32.mxu0 0.0
        %1551 = vmatmul.mubr.f32.gmra.mrb[0].mxu0 %v1456
        %v1552 = vpop.f32.mrb[0].mxu0
        %v1553 = vadd.f32 0.0, %v1552
        %v1554 = vpop.f32.mrb[0].mxu0
        %1555 = vmatprep.mubr.f32.mxu0 0.0
        %1556 = vmatmul.mubr.f32.gmra.mrb[0].mxu0 %v1459
        %v1557 = vpop.f32.mrb[0].mxu0
        %v1558 = vadd.f32 0.0, %v1557
        %v1559 = vpop.f32.mrb[0].mxu0
        %1560 = vmatprep.mubr.f32.mxu0 0.0
        %1561 = vmatmul.mubr.f32.gmra.mrb[0].mxu0 %v1462
        %v1562 = vpop.f32.mrb[0].mxu0
        %v1563 = vadd.f32 0.0, %v1562
        %v1564 = vpop.f32.mrb[0].mxu0
        %1565 = vmatprep.mubr.f32.mxu0 0.0
        %1566 = vmatmul.mubr.f32.gmra.mrb[0].mxu0 %v1465
        %v1567 = vpop.f32.mrb[0].mxu0
        %v1568 = vadd.f32 0.0, %v1567
        %v1569 = vpop.f32.mrb[0].mxu0
        %1570 = vmatprep.mubr.f32.mxu0 0.0
        %1571 = vmatmul.mubr.f32.gmra.mrb[0].mxu0 %v1468
        %v1572 = vpop.f32.mrb[0].mxu0
        %v1573 = vadd.f32 0.0, %v1572
        %v1574 = vpop.f32.mrb[0].mxu0
        %1575 = vmatprep.mubr.f32.mxu0 0.0
        %1576 = vmatmul.mubr.f32.gmra.mrb[0].mxu0 %v1471
        %v1577 = vpop.f32.mrb[0].mxu0
        %v1578 = vadd.f32 0.0, %v1577
        %v1579 = vpop.f32.mrb[0].mxu0
        %1580 = vdwg.mxu0
        %v1581 = vadd.f32 %v1439, %v1543
        %v1582 = vadd.f32 %v1440, %v1548
        %v1583 = vadd.f32 %v1441, %v1553
        %v1584 = vadd.f32 %v1442, %v1558
        %v1585 = vadd.f32 %v1443, %v1563
        %v1586 = vadd.f32 %v1444, %v1568
        %v1587 = vadd.f32 %v1445, %v1573
        %v1588 = vadd.f32 %v1446, %v1578
        %s1589 = scalar_lea.vmem %s2, 32
        %v1590 = vld [vmem:[%s1589] sm:$0xf]
        %v1592 = vsel %vm357, %v1292, 0
        %v1595 = vsel %vm357, %v1294, 0
        %v1598 = vsel %vm357, %v1296, 0
        %v1601 = vsel %vm357, %v1298, 0
        %v1604 = vsel %vm357, %v1300, 0
        %v1607 = vsel %vm357, %v1302, 0
        %v1610 = vsel %vm357, %v1304, 0
        %v1613 = vsel %vm357, %v1290, 0
        %v1616 = vsel %vm382, %v1590, 0
        %1618 = vmatprep.subr.mxu0 0.0
        %1619 = vmatpush1.msra.mxu0 %v1616
        %1620 = vmatprep.subr.mxu0 0.0
        %1621 = vmatpush1.msra.mxu0 0.0
        %1622 = vmatprep.subr.mxu0 0.0
        %1623 = vmatpush1.msra.mxu0 0.0
        %1624 = vmatprep.subr.mxu0 0.0
        %1625 = vmatpush1.msra.mxu0 0.0
        %1626 = vmatprep.subr.mxu0 0.0
        %1627 = vmatpush1.msra.mxu0 0.0
        %1628 = vmatprep.subr.mxu0 0.0
        %1629 = vmatpush1.msra.mxu0 0.0
        %1630 = vmatprep.subr.mxu0 0.0
        %1631 = vmatpush1.msra.mxu0 0.0
        %1632 = vmatprep.subr.mxu0 0.0
        %1633 = vmatpush1.msra.mxu0 0.0
        %1634 = vmatprep.subr.mxu0 0.0
        %1635 = vmatpush1.msra.mxu0 0.0
        %1636 = vmatprep.subr.mxu0 0.0
        %1637 = vmatpush1.msra.mxu0 0.0
        %1638 = vmatprep.subr.mxu0 0.0
        %1639 = vmatpush1.msra.mxu0 0.0
        %1640 = vmatprep.subr.mxu0 0.0
        %1641 = vmatpush1.msra.mxu0 0.0
        %1642 = vmatprep.subr.mxu0 0.0
        %1643 = vmatpush1.msra.mxu0 0.0
        %1644 = vmatprep.subr.mxu0 0.0
        %1645 = vmatpush1.msra.mxu0 0.0
        %1646 = vmatprep.subr.mxu0 0.0
        %1647 = vmatpush1.msra.mxu0 0.0
        %1648 = vmatprep.subr.mxu0 0.0
        %1649 = vmatpush1.msra.mxu0 0.0
        %1650 = vmatprep.subr.mxu0 0.0
        %1651 = vmatpush1.msra.mxu0 0.0
        %1652 = vmatprep.subr.mxu0 0.0
        %1653 = vmatpush1.msra.mxu0 0.0
        %1654 = vmatprep.subr.mxu0 0.0
        %1655 = vmatpush1.msra.mxu0 0.0
        %1656 = vmatprep.subr.mxu0 0.0
        %1657 = vmatpush1.msra.mxu0 0.0
        %1658 = vmatprep.subr.mxu0 0.0
        %1659 = vmatpush1.msra.mxu0 0.0
        %1660 = vmatprep.subr.mxu0 0.0
        %1661 = vmatpush1.msra.mxu0 0.0
        %1662 = vmatprep.subr.mxu0 0.0
        %1663 = vmatpush1.msra.mxu0 0.0
        %1664 = vmatprep.subr.mxu0 0.0
        %1665 = vmatpush1.msra.mxu0 0.0
        %1666 = vmatprep.subr.mxu0 0.0
        %1667 = vmatpush1.msra.mxu0 0.0
        %1668 = vmatprep.subr.mxu0 0.0
        %1669 = vmatpush1.msra.mxu0 0.0
        %1670 = vmatprep.subr.mxu0 0.0
        %1671 = vmatpush1.msra.mxu0 0.0
        %1672 = vmatprep.subr.mxu0 0.0
        %1673 = vmatpush1.msra.mxu0 0.0
        %1674 = vmatprep.subr.mxu0 0.0
        %1675 = vmatpush1.msra.mxu0 0.0
        %1676 = vmatprep.subr.mxu0 0.0
        %1677 = vmatpush1.msra.mxu0 0.0
        %1678 = vmatprep.subr.mxu0 0.0
        %1679 = vmatpush1.msra.mxu0 0.0
        %1680 = vmatprep.subr.mxu0 0.0
        %1681 = vmatpush1.msra.mxu0 0.0
        %1682 = vmatprep.mubr.f32.mxu0 0.0
        %1683 = vmatmul.mubr.f32.gmra.mrb[0].mxu0 %v1592
        %v1684 = vpop.f32.mrb[0].mxu0
        %v1685 = vadd.f32 0.0, %v1684
        %v1686 = vpop.f32.mrb[0].mxu0
        %1687 = vmatprep.mubr.f32.mxu0 0.0
        %1688 = vmatmul.mubr.f32.gmra.mrb[0].mxu0 %v1595
        %v1689 = vpop.f32.mrb[0].mxu0
        %v1690 = vadd.f32 0.0, %v1689
        %v1691 = vpop.f32.mrb[0].mxu0
        %1692 = vmatprep.mubr.f32.mxu0 0.0
        %1693 = vmatmul.mubr.f32.gmra.mrb[0].mxu0 %v1598
        %v1694 = vpop.f32.mrb[0].mxu0
        %v1695 = vadd.f32 0.0, %v1694
        %v1696 = vpop.f32.mrb[0].mxu0
        %1697 = vmatprep.mubr.f32.mxu0 0.0
        %1698 = vmatmul.mubr.f32.gmra.mrb[0].mxu0 %v1601
        %v1699 = vpop.f32.mrb[0].mxu0
        %v1700 = vadd.f32 0.0, %v1699
        %v1701 = vpop.f32.mrb[0].mxu0
        %1702 = vmatprep.mubr.f32.mxu0 0.0
        %1703 = vmatmul.mubr.f32.gmra.mrb[0].mxu0 %v1604
        %v1704 = vpop.f32.mrb[0].mxu0
        %v1705 = vadd.f32 0.0, %v1704
        %v1706 = vpop.f32.mrb[0].mxu0
        %1707 = vmatprep.mubr.f32.mxu0 0.0
        %1708 = vmatmul.mubr.f32.gmra.mrb[0].mxu0 %v1607
        %v1709 = vpop.f32.mrb[0].mxu0
        %v1710 = vadd.f32 0.0, %v1709
        %v1711 = vpop.f32.mrb[0].mxu0
        %1712 = vmatprep.mubr.f32.mxu0 0.0
        %1713 = vmatmul.mubr.f32.gmra.mrb[0].mxu0 %v1610
        %v1714 = vpop.f32.mrb[0].mxu0
        %v1715 = vadd.f32 0.0, %v1714
        %v1716 = vpop.f32.mrb[0].mxu0
        %1717 = vmatprep.mubr.f32.mxu0 0.0
        %1718 = vmatmul.mubr.f32.gmra.mrb[0].mxu0 %v1613
        %v1719 = vpop.f32.mrb[0].mxu0
        %v1720 = vadd.f32 0.0, %v1719
        %v1721 = vpop.f32.mrb[0].mxu0
        %1722 = vdwg.mxu0
        %v1723 = vadd.f32 %v1581, %v1685
        %v1724 = vadd.f32 %v1582, %v1690
        %v1725 = vadd.f32 %v1583, %v1695
        %v1726 = vadd.f32 %v1584, %v1700
        %v1727 = vadd.f32 %v1585, %v1705
        %v1728 = vadd.f32 %v1586, %v1710
        %v1729 = vadd.f32 %v1587, %v1715
        %v1730 = vadd.f32 %v1588, %v1720
        %1731 = vst [vmem:[%s267] sm:$0xff] %v1723
        %1732 = vst [vmem:[%s267 + $0x8] sm:$0xff] %v1724
        %1733 = vst [vmem:[%s267 + $0x10] sm:$0xff] %v1725
        %1734 = vst [vmem:[%s267 + $0x18] sm:$0xff] %v1726
        %1735 = vst [vmem:[%s267 + $0x20] sm:$0xff] %v1727
        %1736 = vst [vmem:[%s267 + $0x28] sm:$0xff] %v1728
        %1737 = vst [vmem:[%s267 + $0x30] sm:$0xff] %v1729
        %1738 = vst [vmem:[%s267 + $0x38] sm:$0xff] %v1730
        %s1739 = sand.u32 %s142, 1
        %s1740 = scalar_lea.sflag [#allocation3], %s1739
        %s1741 = sand.u32 %s142, 1
        %s1742 = smul.addr %s1741, 64
        %s1743 = scalar_lea.vmem [#allocation2], %s1742
        // Predicated region
        $region37: #{tpu_custom_call.1} parent=35 // pred_check
          %p1744 = pneg %p152
        $region38: #{tpu_custom_call.1} parent=35 // pred_check_branch
          %1746 = sbr.rel (%p1744) target = $region40
        $region39: #{tpu_custom_call.1} parent=35 // pred_region
          %s1747 = smul.u32 8, %s23
          %s1749 = ssub.s32 1024, 1024
          %1750 = vsyncadd %s1740, %s1749
          %s1751 = smul.addr %s22, 8
          %s1752 = sadd.s32 %s1747, %s1751
          %s1753 = smul.addr %s1752, 128
          %s1754 = scalar_lea.hbm %s4, %s1753
          %s1755 = sshll.u32 %s1743, 4
          %s1756 = int_to_ptr.vmem [resolvable:$true] %s1755
          %1761 = dma.vmem_to_hbm [thread:$0]  %s1756, 1024, %s1754, %s1740, 128, 128, 8
        $region40: #{tpu_custom_call.1} parent=35 // pred_fallthru
          _
      $region36: #{tpu_custom_call.1} parent=5 // pred_fallthru
        _
      %p1762 = scmp.le.s32.totalorder 2, %s13
      // Predicated region
      $region41: #{tpu_custom_call.1} parent=5 // pred_check
        %p1763 = pneg %p1762
      $region42: #{tpu_custom_call.1} parent=5 // pred_check_branch
        %1765 = sbr.rel (%p1763) target = $region44
      $region43: #{tpu_custom_call.1} parent=5 // pred_region
        %s1766 = ssub.s32 %s13, 2
        // Predicated region
        $region45: #{tpu_custom_call.1} parent=43 // pred_check
          %p1767 = pneg %p158
        $region46: #{tpu_custom_call.1} parent=43 // pred_check_branch
          %1769 = sbr.rel (%p1767) target = $region48
        $region47: #{tpu_custom_call.1} parent=43 // pred_region
          %s1770 = sand.u32 %s143, 1
          %s1771 = scalar_lea.sflag [#allocation3], %s1770
          %s1772 = sand.u32 %s143, 1
          %s1773 = smul.addr %s1772, 64
          %s1774 = scalar_lea.vmem [#allocation2], %s1773
          %1775 = dma.done %s1771, 1024
        $region48: #{tpu_custom_call.1} parent=43 // pred_fallthru
          _
      $region44: #{tpu_custom_call.1} parent=5 // pred_fallthru
        _
    $region6: #{tpu_custom_call.1} parent=1 // loop_footer
      %s17 = sadd.s32 1, %s13
    $region7: #{tpu_custom_call.1} parent=1 // loop_footer_branch
      %12 = sbr.rel target = $region3
    $region8: #{tpu_custom_call.1} parent=1 // loop_exit
      _
    %1776 = vsyncpa [#allocation3], 1
    %s1777 = scalar_lea.sflag [#allocation3], 1
    %1778 = vsyncpa %s1777, 1

</llo_original>
